<compile_context>
chip_gen: v6e
topology: v6e:2x2x1
jax: 0.10.0
libtpu: 0.0.40
codegen_flags: <defaults>
</compile_context>

<pallas_src>
import functools

import jax
import jax.numpy as jnp
import numpy as np
from jax.experimental import pallas as pl
from jax.experimental.pallas import tpu as pltpu


def _round_up(x, m):
    return (x + m - 1) // m * m


# ------------------------------------------------------------------ kernel ---
def _selector_kernel(n_step, hidden_p,
                     ctx_ref, ctxp_ref, tgt_ref, mask0_ref,
                     wcat_ref, b_ref, w1h_ref, w2_ref,
                     out_ref):
    """Whole selector recurrence in a single kernel invocation.

    n_step is a Python int, so the step loop below is fully unrolled at trace
    time (equivalent to lax.fori_loop(..., unroll=True)); LSTM / mask / input
    state are plain carried values.
    """
    bs, ns, _ = ctx_ref.shape          # padded batch, n_ctx slots, padded in_dim
    mlp = w1h_ref.shape[-1]

    # Hoisted broadcasts (JAX does not CSE broadcast_in_dim inside the loop).
    bias = jnp.broadcast_to(b_ref[...], (bs, 4 * hidden_p))       # (bs, 4Hp)
    w2_b = jnp.broadcast_to(w2_ref[...], (bs, ns, mlp))           # (bs, ns, mlp)

    x = tgt_ref[...]                                              # (bs, Dp)
    h = jnp.zeros((bs, hidden_p), jnp.float32)
    c = jnp.zeros((bs, hidden_p), jnp.float32)
    mask = mask0_ref[...]                                         # (bs, ns)

    col = jax.lax.broadcasted_iota(jnp.int32, (bs, ns), 1)

    for s in range(n_step):                                       # statically unrolled
        # ---- fused LSTMCell: gates = [x, h] @ W_cat + b (dropout = identity in eval)
        xh = jnp.concatenate([x, h], axis=-1)                     # (bs, Dp+Hp)
        gates = jnp.dot(xh, wcat_ref[...],
                        preferred_element_type=jnp.float32) + bias
        # Each gate occupies its own lane-aligned hidden_p(=128)-wide block.
        i_g = jax.nn.sigmoid(gates[:, 0 * hidden_p:1 * hidden_p])
        f_g = jax.nn.sigmoid(gates[:, 1 * hidden_p:2 * hidden_p])
        g_g = jnp.tanh(gates[:, 2 * hidden_p:3 * hidden_p])
        o_g = jax.nn.sigmoid(gates[:, 3 * hidden_p:4 * hidden_p])
        c = f_g * c + i_g * g_g
        h = o_g * jnp.tanh(c)

        # ---- score MLP: ctx @ W1_ctx + b1 is precomputed (ctxp_ref); only the
        #      tiny h @ W1_h matvec is step-dependent.
        t = jnp.tanh(ctxp_ref[...] +
                     jnp.dot(h, w1h_ref[...],
                             preferred_element_type=jnp.float32)[:, None, :])
        sc = jnp.sum(t * w2_b, axis=-1)                           # mlp2 -> (bs, ns)
        # sigmoid (monotone) and +b2 (constant) dropped: argmax is unchanged,
        # and the -1e5 mask still dominates the tiny raw scores.
        sc = sc + mask

        out = jnp.argmax(sc, axis=-1).astype(jnp.int32)           # (bs,)
        out_ref[pl.ds(s, 1), :] = out[None, :]

        # ---- idempotent mask-set of chosen slot; gather it as next LSTM input.
        hit = col == out[:, None]                                 # (bs, ns) bool
        mask = jnp.where(hit, -100000.0, mask)
        # TODO(synk): at RoBERTa in_dim this gather should be an einsum / DMA row gather.
        x = jnp.sum(hit.astype(jnp.float32)[:, :, None] * ctx_ref[...], axis=1)


# ----------------------------------------------------------------- wrapper ---
@functools.partial(jax.jit, static_argnums=(3,))
def lstm_selector_forward(target_emb, ctx_emb, ctx_valid_len, n_step, p):
    bs, ns, in_dim = ctx_emb.shape
    hidden = p['w_hh'].shape[1]
    mlp = p['w1'].shape[0]

    Dp = _round_up(in_dim, 128)       # lane-pad LSTM input dim
    Hp = _round_up(hidden, 128)       # lane-pad hidden dim (gate blocks)
    bsp = _round_up(bs, 8)            # sublane-pad batch

    # --- fused, gate-lane-aligned LSTM weights: (Dp+Hp, 4Hp), gate order i,f,g,o
    b_sum = p['b_ih'] + p['b_hh']
    w_cat = jnp.zeros((Dp + Hp, 4 * Hp), jnp.float32)
    bias = jnp.zeros((1, 4 * Hp), jnp.float32)
    for g in range(4):
        w_cat = w_cat.at[:in_dim, g * Hp:g * Hp + hidden].set(
            p['w_ih'][g * hidden:(g + 1) * hidden, :].T)
        w_cat = w_cat.at[Dp:Dp + hidden, g * Hp:g * Hp + hidden].set(
            p['w_hh'][g * hidden:(g + 1) * hidden, :].T)
        bias = bias.at[0, g * Hp:g * Hp + hidden].set(
            b_sum[g * hidden:(g + 1) * hidden])

    # --- score-MLP weights: mlp1(cat([ctx, h])) == ctx@W1c + h@W1h + b1
    w1_t = p['w1'].T                                   # (in_dim+H, mlp)
    w1c = w1_t[:in_dim]                                # (in_dim, mlp)
    w1h_p = jnp.zeros((Hp, mlp), jnp.float32).at[:hidden, :].set(w1_t[in_dim:])
    w2 = p['w2']                                       # (1, mlp)

    # --- step-invariant ctx projection, hoisted out of the recurrence (one big matmul).
    ctx_proj = jnp.einsum('bnd,dm->bnm', ctx_emb, w1c,
                          preferred_element_type=jnp.float32) + p['b1']

    # --- initial mask: mask[i, valid_len[i]:] = -100000
    mask0 = jnp.where(jnp.arange(ns)[None, :] >= ctx_valid_len[:, None],
                      -100000.0, 0.0).astype(jnp.float32)

    def pad_batch(a):
        return jnp.pad(a, [(0, bsp - bs)] + [(0, 0)] * (a.ndim - 1))

    ctx_pad = pad_batch(jnp.pad(ctx_emb, ((0, 0), (0, 0), (0, Dp - in_dim))))
    tgt_pad = pad_batch(jnp.pad(target_emb, ((0, 0), (0, Dp - in_dim))))
    ctx_proj_p = pad_batch(ctx_proj)
    mask0_p = pad_batch(mask0)

    full = lambda shape: pl.BlockSpec(shape, lambda i: (0,) * len(shape))

    outputs = pl.pallas_call(
        functools.partial(_selector_kernel, n_step, Hp),
        out_shape=jax.ShapeDtypeStruct((n_step, bsp), jnp.int32),
        grid=(1,),
        in_specs=[
            full(ctx_pad.shape),
            full(ctx_proj_p.shape),
            full(tgt_pad.shape),
            full(mask0_p.shape),
            full(w_cat.shape),
            full(bias.shape),
            full(w1h_p.shape),
            full(w2.shape),
        ],
        out_specs=full((n_step, bsp)),
        compiler_params=pltpu.CompilerParams(
            dimension_semantics=("arbitrary",),
            vmem_limit_bytes=32 * 1024 * 1024),
    )(ctx_pad, ctx_proj_p, tgt_pad, mask0_p, w_cat, bias, w1h_p, w2)

    log_probs = jnp.zeros((bs,), jnp.float32)          # eval branch never updates it
    return outputs[:, :bs], [], log_probs


def encode(input_ids, p):
    """Stand-in for self.encoder(input_ids)[0][:, 0]."""
    return p['emb'][input_ids[:, 0]]


def selector_model_forward(target, target_len, ctx, ctx_valid_len, n_step, p):
    target_emb = encode(target, p)                                 # (bs, in_dim)
    ctx_emb = jax.vmap(lambda c: encode(c, p))(ctx)                # (bs, ns, in_dim)
    return lstm_selector_forward(target_emb, ctx_emb, ctx_valid_len, n_step, p)


# --------------------------------------------------------------- reference ---
def ref_selector(target_emb, ctx_emb, ctx_valid_len, n_step, p):
    bs, ns, _ = ctx_emb.shape
    hidden = p['w_hh'].shape[1]
    h = jnp.zeros((bs, hidden)); c = jnp.zeros((bs, hidden))
    mask = jnp.where(jnp.arange(ns)[None, :] >= ctx_valid_len[:, None],
                     -100000.0, 0.0)
    x = target_emb
    outs = []
    for _ in range(n_step):
        gates = x @ p['w_ih'].T + p['b_ih'] + h @ p['w_hh'].T + p['b_hh']
        i_g, f_g, g_g, o_g = jnp.split(gates, 4, axis=-1)
        i_g = jax.nn.sigmoid(i_g); f_g = jax.nn.sigmoid(f_g)
        g_g = jnp.tanh(g_g); o_g = jax.nn.sigmoid(o_g)
        c = f_g * c + i_g * g_g
        h = o_g * jnp.tanh(c)
        feat = jnp.concatenate(
            [ctx_emb, jnp.broadcast_to(h[:, None, :], (bs, ns, hidden))], axis=-1)
        t = jnp.tanh(feat @ p['w1'].T + p['b1'])
        sc = jax.nn.sigmoid((t @ p['w2'].T)[..., 0] + p['b2'][0]) + mask
        out = jnp.argmax(sc, axis=-1)
        outs.append(out)
        mask = mask.at[jnp.arange(bs), out].set(-100000.0)
        x = ctx_emb[jnp.arange(bs), out]
    return jnp.stack(outs).astype(jnp.int32)


# ------------------------------------------------------------------- setup ---
def make_params(key, in_dim, hidden, mlp_dim, vocab):
    ks = jax.random.split(key, 9)
    s = 0.1
    return {
        'emb':  jax.random.normal(ks[0], (vocab, in_dim), jnp.float32) * s,
        'w_ih': jax.random.normal(ks[1], (4 * hidden, in_dim), jnp.float32) * s,
        'w_hh': jax.random.normal(ks[2], (4 * hidden, hidden), jnp.float32) * s,
        'b_ih': jax.random.normal(ks[3], (4 * hidden,), jnp.float32) * s,
        'b_hh': jax.random.normal(ks[4], (4 * hidden,), jnp.float32) * s,
        'w1':   jax.random.normal(ks[5], (mlp_dim, hidden + in_dim), jnp.float32) * s,
        'b1':   jax.random.normal(ks[6], (mlp_dim,), jnp.float32) * s,
        'w2':   jax.random.normal(ks[7], (1, mlp_dim), jnp.float32) * s,
        'b2':   jax.random.normal(ks[8], (1,), jnp.float32) * s,
    }


if __name__ == "__main__":
    bs, ns, seq = 2, 8, 8
    in_dim, hidden_dim, mlp_dim = 32, 16, 32
    n_step, vocab = 3, 100

    key = jax.random.PRNGKey(0)
    kp, kt, kc = jax.random.split(key, 3)
    params = make_params(kp, in_dim, hidden_dim, mlp_dim, vocab)

    target = jax.random.randint(kt, (bs, seq), 0, vocab)          # token ids
    ctx = jax.random.randint(kc, (bs, ns, seq), 0, vocab)         # token ids
    target_len = jnp.full((bs,), seq, jnp.int32)
    ctx_valid_len = jnp.array([ns, ns - 2], jnp.int32)            # masks padded slots

    outputs, dist, log_prob = selector_model_forward(
        target, target_len, ctx, ctx_valid_len, n_step, params)
    outputs = jax.block_until_ready(outputs)
    log_prob = jax.block_until_ready(log_prob)

    # correctness check against a pure-JAX reference of the torch forward
    tgt_emb = encode(target, params)
    ctx_emb = jax.vmap(lambda c: encode(c, params))(ctx)
    ref = ref_selector(tgt_emb, ctx_emb, ctx_valid_len, n_step, params)
    assert np.array_equal(np.asarray(outputs), np.asarray(ref)), (outputs, ref)
    assert np.allclose(np.asarray(log_prob), 0.0)

    print("KERNEL_OK")
</pallas_src>

<mosaic_0001>
module attributes {stable_mosaic.version = 11 : i64} {
  func.func @_selector_kernel(%arg0: i32, %arg1: memref<8x8x128xf32, #tpu.memory_space<vmem>>, %arg2: memref<8x8x32xf32, #tpu.memory_space<vmem>>, %arg3: memref<8x128xf32, #tpu.memory_space<vmem>>, %arg4: memref<8x8xf32, #tpu.memory_space<vmem>>, %arg5: memref<256x512xf32, #tpu.memory_space<vmem>>, %arg6: memref<1x512xf32, #tpu.memory_space<vmem>>, %arg7: memref<128x32xf32, #tpu.memory_space<vmem>>, %arg8: memref<1x32xf32, #tpu.memory_space<vmem>>, %arg9: memref<3x8xi32, #tpu.memory_space<vmem>>) attributes {dimension_semantics = [#tpu.dimension_semantics<arbitrary>], iteration_bounds = array<i64: 1>, scalar_prefetch = 0 : i64, scratch_operands = 0 : i64, tpu.core_type = #tpu.core_type<tc>, window_params = [{pipeline_mode = #tpu.pipeline_mode<synchronous>, transform_indices = @transform_0, window_bounds = array<i64: 8, 8, 128>}, {pipeline_mode = #tpu.pipeline_mode<synchronous>, transform_indices = @transform_1, window_bounds = array<i64: 8, 8, 32>}, {pipeline_mode = #tpu.pipeline_mode<synchronous>, transform_indices = @transform_2, window_bounds = array<i64: 8, 128>}, {pipeline_mode = #tpu.pipeline_mode<synchronous>, transform_indices = @transform_3, window_bounds = array<i64: 8, 8>}, {pipeline_mode = #tpu.pipeline_mode<synchronous>, transform_indices = @transform_4, window_bounds = array<i64: 256, 512>}, {pipeline_mode = #tpu.pipeline_mode<synchronous>, transform_indices = @transform_5, window_bounds = array<i64: 1, 512>}, {pipeline_mode = #tpu.pipeline_mode<synchronous>, transform_indices = @transform_6, window_bounds = array<i64: 128, 32>}, {pipeline_mode = #tpu.pipeline_mode<synchronous>, transform_indices = @transform_7, window_bounds = array<i64: 1, 32>}, {pipeline_mode = #tpu.pipeline_mode<synchronous>, transform_indices = @transform_8, window_bounds = array<i64: 3, 8>}]} {
    %c0 = arith.constant 0 : index
    %c0_0 = arith.constant 0 : index
    %0 = vector.load %arg6[%c0, %c0_0] : memref<1x512xf32, #tpu.memory_space<vmem>>, vector<1x512xf32>
    %1 = vector.shape_cast %0 : vector<1x512xf32> to vector<1x512xf32>
    %2 = vector.broadcast %1 : vector<1x512xf32> to vector<8x512xf32>
    %c0_1 = arith.constant 0 : index
    %c0_2 = arith.constant 0 : index
    %3 = vector.load %arg8[%c0_1, %c0_2] : memref<1x32xf32, #tpu.memory_space<vmem>>, vector<1x32xf32>
    %4 = vector.shape_cast %3 : vector<1x32xf32> to vector<1x1x32xf32>
    %5 = vector.broadcast %4 : vector<1x1x32xf32> to vector<8x8x32xf32>
    %c0_3 = arith.constant 0 : index
    %c0_4 = arith.constant 0 : index
    %6 = vector.load %arg3[%c0_3, %c0_4] : memref<8x128xf32, #tpu.memory_space<vmem>>, vector<8x128xf32>
    %cst = arith.constant 0.000000e+00 : f32
    %7 = vector.broadcast %cst : f32 to vector<8x128xf32>
    %cst_5 = arith.constant 0.000000e+00 : f32
    %8 = vector.broadcast %cst_5 : f32 to vector<8x128xf32>
    %c0_6 = arith.constant 0 : index
    %c0_7 = arith.constant 0 : index
    %9 = vector.load %arg4[%c0_6, %c0_7] : memref<8x8xf32, #tpu.memory_space<vmem>>, vector<8x8xf32>
    %10 = tpu.iota {dimensions = array<i32: 1>} : vector<8x8xi32>
    %11 = tpu.concatenate %6, %7 in 1 : vector<8x128xf32>, vector<8x128xf32> -> vector<8x256xf32>
    %c0_8 = arith.constant 0 : index
    %c0_9 = arith.constant 0 : index
    %12 = vector.load %arg5[%c0_8, %c0_9] : memref<256x512xf32, #tpu.memory_space<vmem>>, vector<256x512xf32>
    %cst_10 = arith.constant dense<0.000000e+00> : vector<8x512xf32>
    %13 = tpu.matmul %11, %12, %cst_10 {dimension_numbers = #tpu.dot_dimension_numbers<[1], [0], [0], [1], [0, 0, 1, 1], [], []>} : vector<8x256xf32>, vector<256x512xf32>, vector<8x512xf32> -> vector<8x512xf32>
    %14 = arith.addf %13, %2 : vector<8x512xf32>
    %15 = vector.extract_strided_slice %14 {offsets = [0, 0], sizes = [8, 128], strides = [1, 1]} : vector<8x512xf32> to vector<8x128xf32>
    %16 = arith.negf %15 : vector<8x128xf32>
    %17 = math.exp %16 : vector<8x128xf32>
    %cst_11 = arith.constant 1.000000e+00 : f32
    %18 = vector.broadcast %cst_11 : f32 to vector<8x128xf32>
    %19 = arith.addf %18, %17 : vector<8x128xf32>
    %20 = arith.divf %18, %19 : vector<8x128xf32>
    %21 = vector.extract_strided_slice %14 {offsets = [0, 128], sizes = [8, 128], strides = [1, 1]} : vector<8x512xf32> to vector<8x128xf32>
    %22 = arith.negf %21 : vector<8x128xf32>
    %23 = math.exp %22 : vector<8x128xf32>
    %cst_12 = arith.constant 1.000000e+00 : f32
    %24 = vector.broadcast %cst_12 : f32 to vector<8x128xf32>
    %25 = arith.addf %24, %23 : vector<8x128xf32>
    %26 = arith.divf %24, %25 : vector<8x128xf32>
    %27 = vector.extract_strided_slice %14 {offsets = [0, 256], sizes = [8, 128], strides = [1, 1]} : vector<8x512xf32> to vector<8x128xf32>
    %28 = math.tanh %27 : vector<8x128xf32>
    %29 = vector.extract_strided_slice %14 {offsets = [0, 384], sizes = [8, 128], strides = [1, 1]} : vector<8x512xf32> to vector<8x128xf32>
    %30 = arith.negf %29 : vector<8x128xf32>
    %31 = math.exp %30 : vector<8x128xf32>
    %cst_13 = arith.constant 1.000000e+00 : f32
    %32 = vector.broadcast %cst_13 : f32 to vector<8x128xf32>
    %33 = arith.addf %32, %31 : vector<8x128xf32>
    %34 = arith.divf %32, %33 : vector<8x128xf32>
    %35 = arith.mulf %26, %8 : vector<8x128xf32>
    %36 = arith.mulf %20, %28 : vector<8x128xf32>
    %37 = arith.addf %35, %36 : vector<8x128xf32>
    %38 = math.tanh %37 : vector<8x128xf32>
    %39 = arith.mulf %34, %38 : vector<8x128xf32>
    %c0_14 = arith.constant 0 : index
    %c0_15 = arith.constant 0 : index
    %c0_16 = arith.constant 0 : index
    %40 = vector.load %arg2[%c0_14, %c0_15, %c0_16] : memref<8x8x32xf32, #tpu.memory_space<vmem>>, vector<8x8x32xf32>
    %c0_17 = arith.constant 0 : index
    %c0_18 = arith.constant 0 : index
    %41 = vector.load %arg7[%c0_17, %c0_18] : memref<128x32xf32, #tpu.memory_space<vmem>>, vector<128x32xf32>
    %cst_19 = arith.constant dense<0.000000e+00> : vector<8x32xf32>
    %42 = tpu.matmul %39, %41, %cst_19 {dimension_numbers = #tpu.dot_dimension_numbers<[1], [0], [0], [1], [0, 0, 1, 1], [], []>} : vector<8x128xf32>, vector<128x32xf32>, vector<8x32xf32> -> vector<8x32xf32>
    %43 = vector.shape_cast %42 : vector<8x32xf32> to vector<8x1x32xf32>
    %44 = vector.broadcast %43 : vector<8x1x32xf32> to vector<8x8x32xf32>
    %45 = arith.addf %40, %44 : vector<8x8x32xf32>
    %46 = math.tanh %45 : vector<8x8x32xf32>
    %47 = arith.mulf %46, %5 : vector<8x8x32xf32>
    %cst_20 = arith.constant dense<0.000000e+00> : vector<8x8xf32>
    %48 = vector.multi_reduction <add>, %47, %cst_20 [2] : vector<8x8x32xf32> to vector<8x8xf32>
    %49 = arith.addf %48, %9 : vector<8x8xf32>
    %50 = tpu.reduce_index %49 {axis = 1 : i32, kind = #tpu.reduction_kind<arg_max>} : vector<8x8xf32> -> vector<8xi32>
    %51 = vector.shape_cast %50 : vector<8xi32> to vector<1x8xi32>
    %c0_21 = arith.constant 0 : index
    %c0_22 = arith.constant 0 : index
    %52 = vector.load %arg9[%c0_21, %c0_22] : memref<3x8xi32, #tpu.memory_space<vmem>>, vector<1x8xi32>
    tpu.vector_store %arg9[%c0_21, %c0_22], %51 {strides = array<i32>} : memref<3x8xi32, #tpu.memory_space<vmem>>, vector<1x8xi32>,
    %53 = vector.shape_cast %50 : vector<8xi32> to vector<8x1xi32>
    %54 = vector.broadcast %53 : vector<8x1xi32> to vector<8x8xi32>
    %55 = arith.cmpi eq, %10, %54 : vector<8x8xi32>
    %cst_23 = arith.constant -1.000000e+05 : f32
    %56 = vector.broadcast %cst_23 : f32 to vector<8x8xf32>
    %57 = arith.select %55, %56, %9 : vector<8x8xi1>, vector<8x8xf32>
    %58 = arith.extui %55 : vector<8x8xi1> to vector<8x8xi32>
    %59 = arith.sitofp %58 : vector<8x8xi32> to vector<8x8xf32>
    %60 = vector.shape_cast %59 : vector<8x8xf32> to vector<8x8x1xf32>
    %c0_24 = arith.constant 0 : index
    %c0_25 = arith.constant 0 : index
    %c0_26 = arith.constant 0 : index
    %61 = vector.load %arg1[%c0_24, %c0_25, %c0_26] : memref<8x8x128xf32, #tpu.memory_space<vmem>>, vector<8x8x128xf32>
    %62 = vector.broadcast %60 : vector<8x8x1xf32> to vector<8x8x128xf32>
    %63 = arith.mulf %62, %61 : vector<8x8x128xf32>
    %cst_27 = arith.constant dense<0.000000e+00> : vector<8x128xf32>
    %64 = vector.multi_reduction <add>, %63, %cst_27 [1] : vector<8x8x128xf32> to vector<8x128xf32>
    %65 = tpu.concatenate %64, %39 in 1 : vector<8x128xf32>, vector<8x128xf32> -> vector<8x256xf32>
    %c0_28 = arith.constant 0 : index
    %c0_29 = arith.constant 0 : index
    %66 = vector.load %arg5[%c0_28, %c0_29] : memref<256x512xf32, #tpu.memory_space<vmem>>, vector<256x512xf32>
    %cst_30 = arith.constant dense<0.000000e+00> : vector<8x512xf32>
    %67 = tpu.matmul %65, %66, %cst_30 {dimension_numbers = #tpu.dot_dimension_numbers<[1], [0], [0], [1], [0, 0, 1, 1], [], []>} : vector<8x256xf32>, vector<256x512xf32>, vector<8x512xf32> -> vector<8x512xf32>
    %68 = arith.addf %67, %2 : vector<8x512xf32>
    %69 = vector.extract_strided_slice %68 {offsets = [0, 0], sizes = [8, 128], strides = [1, 1]} : vector<8x512xf32> to vector<8x128xf32>
    %70 = arith.negf %69 : vector<8x128xf32>
    %71 = math.exp %70 : vector<8x128xf32>
    %cst_31 = arith.constant 1.000000e+00 : f32
    %72 = vector.broadcast %cst_31 : f32 to vector<8x128xf32>
    %73 = arith.addf %72, %71 : vector<8x128xf32>
    %74 = arith.divf %72, %73 : vector<8x128xf32>
    %75 = vector.extract_strided_slice %68 {offsets = [0, 128], sizes = [8, 128], strides = [1, 1]} : vector<8x512xf32> to vector<8x128xf32>
    %76 = arith.negf %75 : vector<8x128xf32>
    %77 = math.exp %76 : vector<8x128xf32>
    %cst_32 = arith.constant 1.000000e+00 : f32
    %78 = vector.broadcast %cst_32 : f32 to vector<8x128xf32>
    %79 = arith.addf %78, %77 : vector<8x128xf32>
    %80 = arith.divf %78, %79 : vector<8x128xf32>
    %81 = vector.extract_strided_slice %68 {offsets = [0, 256], sizes = [8, 128], strides = [1, 1]} : vector<8x512xf32> to vector<8x128xf32>
    %82 = math.tanh %81 : vector<8x128xf32>
    %83 = vector.extract_strided_slice %68 {offsets = [0, 384], sizes = [8, 128], strides = [1, 1]} : vector<8x512xf32> to vector<8x128xf32>
    %84 = arith.negf %83 : vector<8x128xf32>
    %85 = math.exp %84 : vector<8x128xf32>
    %cst_33 = arith.constant 1.000000e+00 : f32
    %86 = vector.broadcast %cst_33 : f32 to vector<8x128xf32>
    %87 = arith.addf %86, %85 : vector<8x128xf32>
    %88 = arith.divf %86, %87 : vector<8x128xf32>
    %89 = arith.mulf %80, %37 : vector<8x128xf32>
    %90 = arith.mulf %74, %82 : vector<8x128xf32>
    %91 = arith.addf %89, %90 : vector<8x128xf32>
    %92 = math.tanh %91 : vector<8x128xf32>
    %93 = arith.mulf %88, %92 : vector<8x128xf32>
    %c0_34 = arith.constant 0 : index
    %c0_35 = arith.constant 0 : index
    %c0_36 = arith.constant 0 : index
    %94 = vector.load %arg2[%c0_34, %c0_35, %c0_36] : memref<8x8x32xf32, #tpu.memory_space<vmem>>, vector<8x8x32xf32>
    %c0_37 = arith.constant 0 : index
    %c0_38 = arith.constant 0 : index
    %95 = vector.load %arg7[%c0_37, %c0_38] : memref<128x32xf32, #tpu.memory_space<vmem>>, vector<128x32xf32>
    %cst_39 = arith.constant dense<0.000000e+00> : vector<8x32xf32>
    %96 = tpu.matmul %93, %95, %cst_39 {dimension_numbers = #tpu.dot_dimension_numbers<[1], [0], [0], [1], [0, 0, 1, 1], [], []>} : vector<8x128xf32>, vector<128x32xf32>, vector<8x32xf32> -> vector<8x32xf32>
    %97 = vector.shape_cast %96 : vector<8x32xf32> to vector<8x1x32xf32>
    %98 = vector.broadcast %97 : vector<8x1x32xf32> to vector<8x8x32xf32>
    %99 = arith.addf %94, %98 : vector<8x8x32xf32>
    %100 = math.tanh %99 : vector<8x8x32xf32>
    %101 = arith.mulf %100, %5 : vector<8x8x32xf32>
    %cst_40 = arith.constant dense<0.000000e+00> : vector<8x8xf32>
    %102 = vector.multi_reduction <add>, %101, %cst_40 [2] : vector<8x8x32xf32> to vector<8x8xf32>
    %103 = arith.addf %102, %57 : vector<8x8xf32>
    %104 = tpu.reduce_index %103 {axis = 1 : i32, kind = #tpu.reduction_kind<arg_max>} : vector<8x8xf32> -> vector<8xi32>
    %105 = vector.shape_cast %104 : vector<8xi32> to vector<1x8xi32>
    %c1 = arith.constant 1 : index
    %c0_41 = arith.constant 0 : index
    %106 = vector.load %arg9[%c1, %c0_41] : memref<3x8xi32, #tpu.memory_space<vmem>>, vector<1x8xi32>
    tpu.vector_store %arg9[%c1, %c0_41], %105 {strides = array<i32>} : memref<3x8xi32, #tpu.memory_space<vmem>>, vector<1x8xi32>,
    %107 = vector.shape_cast %104 : vector<8xi32> to vector<8x1xi32>
    %108 = vector.broadcast %107 : vector<8x1xi32> to vector<8x8xi32>
    %109 = arith.cmpi eq, %10, %108 : vector<8x8xi32>
    %cst_42 = arith.constant -1.000000e+05 : f32
    %110 = vector.broadcast %cst_42 : f32 to vector<8x8xf32>
    %111 = arith.select %109, %110, %57 : vector<8x8xi1>, vector<8x8xf32>
    %112 = arith.extui %109 : vector<8x8xi1> to vector<8x8xi32>
    %113 = arith.sitofp %112 : vector<8x8xi32> to vector<8x8xf32>
    %114 = vector.shape_cast %113 : vector<8x8xf32> to vector<8x8x1xf32>
    %c0_43 = arith.constant 0 : index
    %c0_44 = arith.constant 0 : index
    %c0_45 = arith.constant 0 : index
    %115 = vector.load %arg1[%c0_43, %c0_44, %c0_45] : memref<8x8x128xf32, #tpu.memory_space<vmem>>, vector<8x8x128xf32>
    %116 = vector.broadcast %114 : vector<8x8x1xf32> to vector<8x8x128xf32>
    %117 = arith.mulf %116, %115 : vector<8x8x128xf32>
    %cst_46 = arith.constant dense<0.000000e+00> : vector<8x128xf32>
    %118 = vector.multi_reduction <add>, %117, %cst_46 [1] : vector<8x8x128xf32> to vector<8x128xf32>
    %119 = tpu.concatenate %118, %93 in 1 : vector<8x128xf32>, vector<8x128xf32> -> vector<8x256xf32>
    %c0_47 = arith.constant 0 : index
    %c0_48 = arith.constant 0 : index
    %120 = vector.load %arg5[%c0_47, %c0_48] : memref<256x512xf32, #tpu.memory_space<vmem>>, vector<256x512xf32>
    %cst_49 = arith.constant dense<0.000000e+00> : vector<8x512xf32>
    %121 = tpu.matmul %119, %120, %cst_49 {dimension_numbers = #tpu.dot_dimension_numbers<[1], [0], [0], [1], [0, 0, 1, 1], [], []>} : vector<8x256xf32>, vector<256x512xf32>, vector<8x512xf32> -> vector<8x512xf32>
    %122 = arith.addf %121, %2 : vector<8x512xf32>
    %123 = vector.extract_strided_slice %122 {offsets = [0, 0], sizes = [8, 128], strides = [1, 1]} : vector<8x512xf32> to vector<8x128xf32>
    %124 = arith.negf %123 : vector<8x128xf32>
    %125 = math.exp %124 : vector<8x128xf32>
    %cst_50 = arith.constant 1.000000e+00 : f32
    %126 = vector.broadcast %cst_50 : f32 to vector<8x128xf32>
    %127 = arith.addf %126, %125 : vector<8x128xf32>
    %128 = arith.divf %126, %127 : vector<8x128xf32>
    %129 = vector.extract_strided_slice %122 {offsets = [0, 128], sizes = [8, 128], strides = [1, 1]} : vector<8x512xf32> to vector<8x128xf32>
    %130 = arith.negf %129 : vector<8x128xf32>
    %131 = math.exp %130 : vector<8x128xf32>
    %cst_51 = arith.constant 1.000000e+00 : f32
    %132 = vector.broadcast %cst_51 : f32 to vector<8x128xf32>
    %133 = arith.addf %132, %131 : vector<8x128xf32>
    %134 = arith.divf %132, %133 : vector<8x128xf32>
    %135 = vector.extract_strided_slice %122 {offsets = [0, 256], sizes = [8, 128], strides = [1, 1]} : vector<8x512xf32> to vector<8x128xf32>
    %136 = math.tanh %135 : vector<8x128xf32>
    %137 = vector.extract_strided_slice %122 {offsets = [0, 384], sizes = [8, 128], strides = [1, 1]} : vector<8x512xf32> to vector<8x128xf32>
    %138 = arith.negf %137 : vector<8x128xf32>
    %139 = math.exp %138 : vector<8x128xf32>
    %cst_52 = arith.constant 1.000000e+00 : f32
    %140 = vector.broadcast %cst_52 : f32 to vector<8x128xf32>
    %141 = arith.addf %140, %139 : vector<8x128xf32>
    %142 = arith.divf %140, %141 : vector<8x128xf32>
    %143 = arith.mulf %134, %91 : vector<8x128xf32>
    %144 = arith.mulf %128, %136 : vector<8x128xf32>
    %145 = arith.addf %143, %144 : vector<8x128xf32>
    %146 = math.tanh %145 : vector<8x128xf32>
    %147 = arith.mulf %142, %146 : vector<8x128xf32>
    %c0_53 = arith.constant 0 : index
    %c0_54 = arith.constant 0 : index
    %c0_55 = arith.constant 0 : index
    %148 = vector.load %arg2[%c0_53, %c0_54, %c0_55] : memref<8x8x32xf32, #tpu.memory_space<vmem>>, vector<8x8x32xf32>
    %c0_56 = arith.constant 0 : index
    %c0_57 = arith.constant 0 : index
    %149 = vector.load %arg7[%c0_56, %c0_57] : memref<128x32xf32, #tpu.memory_space<vmem>>, vector<128x32xf32>
    %cst_58 = arith.constant dense<0.000000e+00> : vector<8x32xf32>
    %150 = tpu.matmul %147, %149, %cst_58 {dimension_numbers = #tpu.dot_dimension_numbers<[1], [0], [0], [1], [0, 0, 1, 1], [], []>} : vector<8x128xf32>, vector<128x32xf32>, vector<8x32xf32> -> vector<8x32xf32>
    %151 = vector.shape_cast %150 : vector<8x32xf32> to vector<8x1x32xf32>
    %152 = vector.broadcast %151 : vector<8x1x32xf32> to vector<8x8x32xf32>
    %153 = arith.addf %148, %152 : vector<8x8x32xf32>
    %154 = math.tanh %153 : vector<8x8x32xf32>
    %155 = arith.mulf %154, %5 : vector<8x8x32xf32>
    %cst_59 = arith.constant dense<0.000000e+00> : vector<8x8xf32>
    %156 = vector.multi_reduction <add>, %155, %cst_59 [2] : vector<8x8x32xf32> to vector<8x8xf32>
    %157 = arith.addf %156, %111 : vector<8x8xf32>
    %158 = tpu.reduce_index %157 {axis = 1 : i32, kind = #tpu.reduction_kind<arg_max>} : vector<8x8xf32> -> vector<8xi32>
    %159 = vector.shape_cast %158 : vector<8xi32> to vector<1x8xi32>
    %c2 = arith.constant 2 : index
    %c0_60 = arith.constant 0 : index
    %160 = vector.load %arg9[%c2, %c0_60] : memref<3x8xi32, #tpu.memory_space<vmem>>, vector<1x8xi32>
    tpu.vector_store %arg9[%c2, %c0_60], %159 {strides = array<i32>} : memref<3x8xi32, #tpu.memory_space<vmem>>, vector<1x8xi32>,
    return
  }
  func.func @transform_0(%arg0: i32) -> (i32, i32, i32) {
    %c0_i32 = arith.constant 0 : i32
    %c0_i32_0 = arith.constant 0 : i32
    %c0_i32_1 = arith.constant 0 : i32
    %c0_i32_2 = arith.constant 0 : i32
    return %c0_i32, %c0_i32_0, %c0_i32_1 : i32, i32, i32
  }
  func.func @transform_1(%arg0: i32) -> (i32, i32, i32) {
    %c0_i32 = arith.constant 0 : i32
    %c0_i32_0 = arith.constant 0 : i32
    %c0_i32_1 = arith.constant 0 : i32
    %c0_i32_2 = arith.constant 0 : i32
    return %c0_i32, %c0_i32_0, %c0_i32_1 : i32, i32, i32
  }
  func.func @transform_2(%arg0: i32) -> (i32, i32) {
    %c0_i32 = arith.constant 0 : i32
    %c0_i32_0 = arith.constant 0 : i32
    %c0_i32_1 = arith.constant 0 : i32
    return %c0_i32, %c0_i32_0 : i32, i32
  }
  func.func @transform_3(%arg0: i32) -> (i32, i32) {
    %c0_i32 = arith.constant 0 : i32
    %c0_i32_0 = arith.constant 0 : i32
    %c0_i32_1 = arith.constant 0 : i32
    return %c0_i32, %c0_i32_0 : i32, i32
  }
  func.func @transform_4(%arg0: i32) -> (i32, i32) {
    %c0_i32 = arith.constant 0 : i32
    %c0_i32_0 = arith.constant 0 : i32
    %c0_i32_1 = arith.constant 0 : i32
    return %c0_i32, %c0_i32_0 : i32, i32
  }
  func.func @transform_5(%arg0: i32) -> (i32, i32) {
    %c0_i32 = arith.constant 0 : i32
    %c0_i32_0 = arith.constant 0 : i32
    %c0_i32_1 = arith.constant 0 : i32
    return %c0_i32, %c0_i32_0 : i32, i32
  }
  func.func @transform_6(%arg0: i32) -> (i32, i32) {
    %c0_i32 = arith.constant 0 : i32
    %c0_i32_0 = arith.constant 0 : i32
    %c0_i32_1 = arith.constant 0 : i32
    return %c0_i32, %c0_i32_0 : i32, i32
  }
  func.func @transform_7(%arg0: i32) -> (i32, i32) {
    %c0_i32 = arith.constant 0 : i32
    %c0_i32_0 = arith.constant 0 : i32
    %c0_i32_1 = arith.constant 0 : i32
    return %c0_i32, %c0_i32_0 : i32, i32
  }
  func.func @transform_8(%arg0: i32) -> (i32, i32) {
    %c0_i32 = arith.constant 0 : i32
    %c0_i32_0 = arith.constant 0 : i32
    %c0_i32_1 = arith.constant 0 : i32
    return %c0_i32, %c0_i32_0 : i32, i32
  }
}

</mosaic_0001>

<llo_original>
// kernel: lstm_selector_forward.1
$region0: #{lstm_selector_forward.1}
  #allocation0 [shape = 'u32[]', space=smem, size = 0x4, offset = 0x4, fixed_abs, tag = 'smem constant byte address 0x4 - core index']
  #allocation1 [shape = 'u32[144,128]{1,0:T(1,128)}', space=vmem, size = 0x12000, scoped, tag = 'internal scratch']
  %s0 = inlined_call_operand.vmem [shape: f32[8,8,128], index: 0, kind: input, shape index: {}]
  %s1 = inlined_call_operand.vmem [shape: f32[8,8,32], index: 1, kind: input, shape index: {}]
  %s2 = inlined_call_operand.vmem [shape: f32[8,128], index: 2, kind: input, shape index: {}]
  %s3 = inlined_call_operand.vmem [shape: f32[8,8], index: 3, kind: input, shape index: {}]
  %s4 = inlined_call_operand.vmem [shape: f32[256,512], index: 4, kind: input, shape index: {}]
  %s5 = inlined_call_operand.vmem [shape: f32[1,512], index: 5, kind: input, shape index: {}]
  %s6 = inlined_call_operand.vmem [shape: f32[128,32], index: 6, kind: input, shape index: {}]
  %s7 = inlined_call_operand.vmem [shape: f32[1,32], index: 7, kind: input, shape index: {}]
  %s8 = inlined_call_operand.vmem [shape: s32[3,8], index: 8, kind: output, shape index: {}]
  %s9 = sld [smem:[#allocation0]]
  $region42: #{lstm_selector_forward.1} parent=0
    _
  %s11 = ssub.s32 1, %s9
  %s12 = scalar_select 0, %s11, %s9
  // Predicated region
  $region2: #{lstm_selector_forward.1} parent=0 // pred_check
    _
  $region3: #{lstm_selector_forward.1} parent=0 // pred_check_branch
    %14 = sbr.rel (0) target = $region5
  $region4: #{lstm_selector_forward.1} parent=0 // pred_region
    _
  $region5: #{lstm_selector_forward.1} parent=0 // pred_fallthru
    _
  // Predicated region
  $region6: #{lstm_selector_forward.1} parent=0 // pred_check
    _
  $region7: #{lstm_selector_forward.1} parent=0 // pred_check_branch
    %16 = sbr.rel (0) target = $region9
  $region8: #{lstm_selector_forward.1} parent=0 // pred_region
    _
  $region9: #{lstm_selector_forward.1} parent=0 // pred_fallthru
    _
  // Predicated region
  $region10: #{lstm_selector_forward.1} parent=0 // pred_check
    _
  $region11: #{lstm_selector_forward.1} parent=0 // pred_check_branch
    %18 = sbr.rel (0) target = $region13
  $region12: #{lstm_selector_forward.1} parent=0 // pred_region
    _
  $region13: #{lstm_selector_forward.1} parent=0 // pred_fallthru
    _
  // Predicated region
  $region14: #{lstm_selector_forward.1} parent=0 // pred_check
    _
  $region15: #{lstm_selector_forward.1} parent=0 // pred_check_branch
    %20 = sbr.rel (0) target = $region17
  $region16: #{lstm_selector_forward.1} parent=0 // pred_region
    _
  $region17: #{lstm_selector_forward.1} parent=0 // pred_fallthru
    _
  // Predicated region
  $region18: #{lstm_selector_forward.1} parent=0 // pred_check
    _
  $region19: #{lstm_selector_forward.1} parent=0 // pred_check_branch
    %22 = sbr.rel (0) target = $region21
  $region20: #{lstm_selector_forward.1} parent=0 // pred_region
    _
  $region21: #{lstm_selector_forward.1} parent=0 // pred_fallthru
    _
  // Predicated region
  $region22: #{lstm_selector_forward.1} parent=0 // pred_check
    _
  $region23: #{lstm_selector_forward.1} parent=0 // pred_check_branch
    %24 = sbr.rel (0) target = $region25
  $region24: #{lstm_selector_forward.1} parent=0 // pred_region
    _
  $region25: #{lstm_selector_forward.1} parent=0 // pred_fallthru
    _
  // Predicated region
  $region26: #{lstm_selector_forward.1} parent=0 // pred_check
    _
  $region27: #{lstm_selector_forward.1} parent=0 // pred_check_branch
    %26 = sbr.rel (0) target = $region29
  $region28: #{lstm_selector_forward.1} parent=0 // pred_region
    _
  $region29: #{lstm_selector_forward.1} parent=0 // pred_fallthru
    _
  // Predicated region
  $region30: #{lstm_selector_forward.1} parent=0 // pred_check
    _
  $region31: #{lstm_selector_forward.1} parent=0 // pred_check_branch
    %28 = sbr.rel (0) target = $region33
  $region32: #{lstm_selector_forward.1} parent=0 // pred_region
    _
  $region33: #{lstm_selector_forward.1} parent=0 // pred_fallthru
    _
  %v29 = vld [vmem:[%s5] sm:$0xf]
  %v31 = vlaneseq
  %v32 = vshrl.u32 %v31, 7
  %v33 = vsub.s32 0, %v32
  %v34 = vrot.slane %v29, %v33
  %v35 = vlaneseq
  %v36 = vshrl.u32 %v35, 7
  %v37 = vsub.s32 1, %v36
  %v38 = vrot.slane %v29, %v37
  %v39 = vlaneseq
  %v40 = vshrl.u32 %v39, 7
  %v41 = vsub.s32 2, %v40
  %v42 = vrot.slane %v29, %v41
  %v43 = vlaneseq
  %v44 = vshrl.u32 %v43, 7
  %v45 = vsub.s32 3, %v44
  %v46 = vrot.slane %v29, %v45
  %v51 = vld [vmem:[%s7] sm:$0x1]
  %v53 = vlaneseq
  %v54 = vshrl.u32 %v53, 7
  %v55 = vsub.s32 0, %v54
  %v56 = vrot.slane %v51, %v55
  %v58 = vld [vmem:[%s2] sm:$0xff]
  %v59 = vld [vmem:[%s3] sm:$0xff]
  %v60 = vlaneseq
  %v61 = vand.u32 %v60, 127
  %v62 = vld [vmem:[%s4] sm:$0xff]
  %v63 = vld [vmem:[%s4 + $0x8] sm:$0xff]
  %v64 = vld [vmem:[%s4 + $0x10] sm:$0xff]
  %v65 = vld [vmem:[%s4 + $0x18] sm:$0xff]
  %v66 = vld [vmem:[%s4 + $0x20] sm:$0xff]
  %v67 = vld [vmem:[%s4 + $0x28] sm:$0xff]
  %v68 = vld [vmem:[%s4 + $0x30] sm:$0xff]
  %v69 = vld [vmem:[%s4 + $0x38] sm:$0xff]
  %v70 = vld [vmem:[%s4 + $0x40] sm:$0xff]
  %v71 = vld [vmem:[%s4 + $0x48] sm:$0xff]
  %v72 = vld [vmem:[%s4 + $0x50] sm:$0xff]
  %v73 = vld [vmem:[%s4 + $0x58] sm:$0xff]
  %v74 = vld [vmem:[%s4 + $0x60] sm:$0xff]
  %v75 = vld [vmem:[%s4 + $0x68] sm:$0xff]
  %v76 = vld [vmem:[%s4 + $0x70] sm:$0xff]
  %v77 = vld [vmem:[%s4 + $0x78] sm:$0xff]
  %v78 = vld [vmem:[%s4 + $0x80] sm:$0xff]
  %v79 = vld [vmem:[%s4 + $0x88] sm:$0xff]
  %v80 = vld [vmem:[%s4 + $0x90] sm:$0xff]
  %v81 = vld [vmem:[%s4 + $0x98] sm:$0xff]
  %v82 = vld [vmem:[%s4 + $0xa0] sm:$0xff]
  %v83 = vld [vmem:[%s4 + $0xa8] sm:$0xff]
  %v84 = vld [vmem:[%s4 + $0xb0] sm:$0xff]
  %v85 = vld [vmem:[%s4 + $0xb8] sm:$0xff]
  %v86 = vld [vmem:[%s4 + $0xc0] sm:$0xff]
  %v87 = vld [vmem:[%s4 + $0xc8] sm:$0xff]
  %v88 = vld [vmem:[%s4 + $0xd0] sm:$0xff]
  %v89 = vld [vmem:[%s4 + $0xd8] sm:$0xff]
  %v90 = vld [vmem:[%s4 + $0xe0] sm:$0xff]
  %v91 = vld [vmem:[%s4 + $0xe8] sm:$0xff]
  %v92 = vld [vmem:[%s4 + $0xf0] sm:$0xff]
  %v93 = vld [vmem:[%s4 + $0xf8] sm:$0xff]
  %v94 = vld [vmem:[%s4 + $0x100] sm:$0xff]
  %v95 = vld [vmem:[%s4 + $0x108] sm:$0xff]
  %v96 = vld [vmem:[%s4 + $0x110] sm:$0xff]
  %v97 = vld [vmem:[%s4 + $0x118] sm:$0xff]
  %v98 = vld [vmem:[%s4 + $0x120] sm:$0xff]
  %v99 = vld [vmem:[%s4 + $0x128] sm:$0xff]
  %v100 = vld [vmem:[%s4 + $0x130] sm:$0xff]
  %v101 = vld [vmem:[%s4 + $0x138] sm:$0xff]
  %v102 = vld [vmem:[%s4 + $0x140] sm:$0xff]
  %v103 = vld [vmem:[%s4 + $0x148] sm:$0xff]
  %v104 = vld [vmem:[%s4 + $0x150] sm:$0xff]
  %v105 = vld [vmem:[%s4 + $0x158] sm:$0xff]
  %v106 = vld [vmem:[%s4 + $0x160] sm:$0xff]
  %v107 = vld [vmem:[%s4 + $0x168] sm:$0xff]
  %v108 = vld [vmem:[%s4 + $0x170] sm:$0xff]
  %v109 = vld [vmem:[%s4 + $0x178] sm:$0xff]
  %v110 = vld [vmem:[%s4 + $0x180] sm:$0xff]
  %v111 = vld [vmem:[%s4 + $0x188] sm:$0xff]
  %v112 = vld [vmem:[%s4 + $0x190] sm:$0xff]
  %v113 = vld [vmem:[%s4 + $0x198] sm:$0xff]
  %v114 = vld [vmem:[%s4 + $0x1a0] sm:$0xff]
  %v115 = vld [vmem:[%s4 + $0x1a8] sm:$0xff]
  %v116 = vld [vmem:[%s4 + $0x1b0] sm:$0xff]
  %v117 = vld [vmem:[%s4 + $0x1b8] sm:$0xff]
  %v118 = vld [vmem:[%s4 + $0x1c0] sm:$0xff]
  %v119 = vld [vmem:[%s4 + $0x1c8] sm:$0xff]
  %v120 = vld [vmem:[%s4 + $0x1d0] sm:$0xff]
  %v121 = vld [vmem:[%s4 + $0x1d8] sm:$0xff]
  %v122 = vld [vmem:[%s4 + $0x1e0] sm:$0xff]
  %v123 = vld [vmem:[%s4 + $0x1e8] sm:$0xff]
  %v124 = vld [vmem:[%s4 + $0x1f0] sm:$0xff]
  %v125 = vld [vmem:[%s4 + $0x1f8] sm:$0xff]
  %v126 = vld [vmem:[%s4 + $0x200] sm:$0xff]
  %v127 = vld [vmem:[%s4 + $0x208] sm:$0xff]
  %v128 = vld [vmem:[%s4 + $0x210] sm:$0xff]
  %v129 = vld [vmem:[%s4 + $0x218] sm:$0xff]
  %v130 = vld [vmem:[%s4 + $0x220] sm:$0xff]
  %v131 = vld [vmem:[%s4 + $0x228] sm:$0xff]
  %v132 = vld [vmem:[%s4 + $0x230] sm:$0xff]
  %v133 = vld [vmem:[%s4 + $0x238] sm:$0xff]
  %v134 = vld [vmem:[%s4 + $0x240] sm:$0xff]
  %v135 = vld [vmem:[%s4 + $0x248] sm:$0xff]
  %v136 = vld [vmem:[%s4 + $0x250] sm:$0xff]
  %v137 = vld [vmem:[%s4 + $0x258] sm:$0xff]
  %v138 = vld [vmem:[%s4 + $0x260] sm:$0xff]
  %v139 = vld [vmem:[%s4 + $0x268] sm:$0xff]
  %v140 = vld [vmem:[%s4 + $0x270] sm:$0xff]
  %v141 = vld [vmem:[%s4 + $0x278] sm:$0xff]
  %v142 = vld [vmem:[%s4 + $0x280] sm:$0xff]
  %v143 = vld [vmem:[%s4 + $0x288] sm:$0xff]
  %v144 = vld [vmem:[%s4 + $0x290] sm:$0xff]
  %v145 = vld [vmem:[%s4 + $0x298] sm:$0xff]
  %v146 = vld [vmem:[%s4 + $0x2a0] sm:$0xff]
  %v147 = vld [vmem:[%s4 + $0x2a8] sm:$0xff]
  %v148 = vld [vmem:[%s4 + $0x2b0] sm:$0xff]
  %v149 = vld [vmem:[%s4 + $0x2b8] sm:$0xff]
  %v150 = vld [vmem:[%s4 + $0x2c0] sm:$0xff]
  %v151 = vld [vmem:[%s4 + $0x2c8] sm:$0xff]
  %v152 = vld [vmem:[%s4 + $0x2d0] sm:$0xff]
  %v153 = vld [vmem:[%s4 + $0x2d8] sm:$0xff]
  %v154 = vld [vmem:[%s4 + $0x2e0] sm:$0xff]
  %v155 = vld [vmem:[%s4 + $0x2e8] sm:$0xff]
  %v156 = vld [vmem:[%s4 + $0x2f0] sm:$0xff]
  %v157 = vld [vmem:[%s4 + $0x2f8] sm:$0xff]
  %v158 = vld [vmem:[%s4 + $0x300] sm:$0xff]
  %v159 = vld [vmem:[%s4 + $0x308] sm:$0xff]
  %v160 = vld [vmem:[%s4 + $0x310] sm:$0xff]
  %v161 = vld [vmem:[%s4 + $0x318] sm:$0xff]
  %v162 = vld [vmem:[%s4 + $0x320] sm:$0xff]
  %v163 = vld [vmem:[%s4 + $0x328] sm:$0xff]
  %v164 = vld [vmem:[%s4 + $0x330] sm:$0xff]
  %v165 = vld [vmem:[%s4 + $0x338] sm:$0xff]
  %v166 = vld [vmem:[%s4 + $0x340] sm:$0xff]
  %v167 = vld [vmem:[%s4 + $0x348] sm:$0xff]
  %v168 = vld [vmem:[%s4 + $0x350] sm:$0xff]
  %v169 = vld [vmem:[%s4 + $0x358] sm:$0xff]
  %v170 = vld [vmem:[%s4 + $0x360] sm:$0xff]
  %v171 = vld [vmem:[%s4 + $0x368] sm:$0xff]
  %v172 = vld [vmem:[%s4 + $0x370] sm:$0xff]
  %v173 = vld [vmem:[%s4 + $0x378] sm:$0xff]
  %v174 = vld [vmem:[%s4 + $0x380] sm:$0xff]
  %v175 = vld [vmem:[%s4 + $0x388] sm:$0xff]
  %v176 = vld [vmem:[%s4 + $0x390] sm:$0xff]
  %v177 = vld [vmem:[%s4 + $0x398] sm:$0xff]
  %v178 = vld [vmem:[%s4 + $0x3a0] sm:$0xff]
  %v179 = vld [vmem:[%s4 + $0x3a8] sm:$0xff]
  %v180 = vld [vmem:[%s4 + $0x3b0] sm:$0xff]
  %v181 = vld [vmem:[%s4 + $0x3b8] sm:$0xff]
  %v182 = vld [vmem:[%s4 + $0x3c0] sm:$0xff]
  %v183 = vld [vmem:[%s4 + $0x3c8] sm:$0xff]
  %v184 = vld [vmem:[%s4 + $0x3d0] sm:$0xff]
  %v185 = vld [vmem:[%s4 + $0x3d8] sm:$0xff]
  %v186 = vld [vmem:[%s4 + $0x3e0] sm:$0xff]
  %v187 = vld [vmem:[%s4 + $0x3e8] sm:$0xff]
  %v188 = vld [vmem:[%s4 + $0x3f0] sm:$0xff]
  %v189 = vld [vmem:[%s4 + $0x3f8] sm:$0xff]
  %190 = vmatprep.subr.mxu0 %v123
  %191 = vmatpush1.msra.mxu0 %v122
  %192 = vmatprep.subr.mxu0 %v119
  %193 = vmatpush1.msra.mxu0 %v118
  %194 = vmatprep.subr.mxu0 %v115
  %195 = vmatpush1.msra.mxu0 %v114
  %196 = vmatprep.subr.mxu0 %v111
  %197 = vmatpush1.msra.mxu0 %v110
  %198 = vmatprep.subr.mxu0 %v107
  %199 = vmatpush1.msra.mxu0 %v106
  %200 = vmatprep.subr.mxu0 %v103
  %201 = vmatpush1.msra.mxu0 %v102
  %202 = vmatprep.subr.mxu0 %v99
  %203 = vmatpush1.msra.mxu0 %v98
  %204 = vmatprep.subr.mxu0 %v95
  %205 = vmatpush1.msra.mxu0 %v94
  %206 = vmatprep.subr.mxu0 %v91
  %207 = vmatpush1.msra.mxu0 %v90
  %208 = vmatprep.subr.mxu0 %v87
  %209 = vmatpush1.msra.mxu0 %v86
  %210 = vmatprep.subr.mxu0 %v83
  %211 = vmatpush1.msra.mxu0 %v82
  %212 = vmatprep.subr.mxu0 %v79
  %213 = vmatpush1.msra.mxu0 %v78
  %214 = vmatprep.subr.mxu0 %v75
  %215 = vmatpush1.msra.mxu0 %v74
  %216 = vmatprep.subr.mxu0 %v71
  %217 = vmatpush1.msra.mxu0 %v70
  %218 = vmatprep.subr.mxu0 %v67
  %219 = vmatpush1.msra.mxu0 %v66
  %220 = vmatprep.subr.mxu0 %v63
  %221 = vmatpush1.msra.mxu0 %v62
  %222 = vmatprep.subr.mxu0 %v187
  %223 = vmatpush2.msra.mxu0 %v186
  %224 = vmatprep.subr.mxu0 %v183
  %225 = vmatpush2.msra.mxu0 %v182
  %226 = vmatprep.subr.mxu0 %v179
  %227 = vmatpush2.msra.mxu0 %v178
  %228 = vmatprep.subr.mxu0 %v175
  %229 = vmatpush2.msra.mxu0 %v174
  %230 = vmatprep.subr.mxu0 %v171
  %231 = vmatpush2.msra.mxu0 %v170
  %232 = vmatprep.subr.mxu0 %v167
  %233 = vmatpush2.msra.mxu0 %v166
  %234 = vmatprep.subr.mxu0 %v163
  %235 = vmatpush2.msra.mxu0 %v162
  %236 = vmatprep.subr.mxu0 %v159
  %237 = vmatpush2.msra.mxu0 %v158
  %238 = vmatprep.subr.mxu0 %v155
  %239 = vmatpush2.msra.mxu0 %v154
  %240 = vmatprep.subr.mxu0 %v151
  %241 = vmatpush2.msra.mxu0 %v150
  %242 = vmatprep.subr.mxu0 %v147
  %243 = vmatpush2.msra.mxu0 %v146
  %244 = vmatprep.subr.mxu0 %v143
  %245 = vmatpush2.msra.mxu0 %v142
  %246 = vmatprep.subr.mxu0 %v139
  %247 = vmatpush2.msra.mxu0 %v138
  %248 = vmatprep.subr.mxu0 %v135
  %249 = vmatpush2.msra.mxu0 %v134
  %250 = vmatprep.subr.mxu0 %v131
  %251 = vmatpush2.msra.mxu0 %v130
  %252 = vmatprep.subr.mxu0 %v127
  %253 = vmatpush2.msra.mxu0 %v126
  %254 = vmatprep.mubr.f32.mxu0 0.0
  %255 = vmatmul.mubr.f32.gmra.mxu0 %v58
  %v256 = vpop.f32.mrf.mxu0
  %v257 = vadd.f32 %v34, %v256
  %v258 = vpop.f32.mrf.mxu0
  %v259 = vadd.f32 %v38, %v258
  %260 = vdwg.mxu0
  %261 = vmatprep.subr.mxu0 %v125
  %262 = vmatpush1.msra.mxu0 %v124
  %263 = vmatprep.subr.mxu0 %v121
  %264 = vmatpush1.msra.mxu0 %v120
  %265 = vmatprep.subr.mxu0 %v117
  %266 = vmatpush1.msra.mxu0 %v116
  %267 = vmatprep.subr.mxu0 %v113
  %268 = vmatpush1.msra.mxu0 %v112
  %269 = vmatprep.subr.mxu0 %v109
  %270 = vmatpush1.msra.mxu0 %v108
  %271 = vmatprep.subr.mxu0 %v105
  %272 = vmatpush1.msra.mxu0 %v104
  %273 = vmatprep.subr.mxu0 %v101
  %274 = vmatpush1.msra.mxu0 %v100
  %275 = vmatprep.subr.mxu0 %v97
  %276 = vmatpush1.msra.mxu0 %v96
  %277 = vmatprep.subr.mxu0 %v93
  %278 = vmatpush1.msra.mxu0 %v92
  %279 = vmatprep.subr.mxu0 %v89
  %280 = vmatpush1.msra.mxu0 %v88
  %281 = vmatprep.subr.mxu0 %v85
  %282 = vmatpush1.msra.mxu0 %v84
  %283 = vmatprep.subr.mxu0 %v81
  %284 = vmatpush1.msra.mxu0 %v80
  %285 = vmatprep.subr.mxu0 %v77
  %286 = vmatpush1.msra.mxu0 %v76
  %287 = vmatprep.subr.mxu0 %v73
  %288 = vmatpush1.msra.mxu0 %v72
  %289 = vmatprep.subr.mxu0 %v69
  %290 = vmatpush1.msra.mxu0 %v68
  %291 = vmatprep.subr.mxu0 %v65
  %292 = vmatpush1.msra.mxu0 %v64
  %293 = vmatprep.subr.mxu0 %v189
  %294 = vmatpush2.msra.mxu0 %v188
  %295 = vmatprep.subr.mxu0 %v185
  %296 = vmatpush2.msra.mxu0 %v184
  %297 = vmatprep.subr.mxu0 %v181
  %298 = vmatpush2.msra.mxu0 %v180
  %299 = vmatprep.subr.mxu0 %v177
  %300 = vmatpush2.msra.mxu0 %v176
  %301 = vmatprep.subr.mxu0 %v173
  %302 = vmatpush2.msra.mxu0 %v172
  %303 = vmatprep.subr.mxu0 %v169
  %304 = vmatpush2.msra.mxu0 %v168
  %305 = vmatprep.subr.mxu0 %v165
  %306 = vmatpush2.msra.mxu0 %v164
  %307 = vmatprep.subr.mxu0 %v161
  %308 = vmatpush2.msra.mxu0 %v160
  %309 = vmatprep.subr.mxu0 %v157
  %310 = vmatpush2.msra.mxu0 %v156
  %311 = vmatprep.subr.mxu0 %v153
  %312 = vmatpush2.msra.mxu0 %v152
  %313 = vmatprep.subr.mxu0 %v149
  %314 = vmatpush2.msra.mxu0 %v148
  %315 = vmatprep.subr.mxu0 %v145
  %316 = vmatpush2.msra.mxu0 %v144
  %317 = vmatprep.subr.mxu0 %v141
  %318 = vmatpush2.msra.mxu0 %v140
  %319 = vmatprep.subr.mxu0 %v137
  %320 = vmatpush2.msra.mxu0 %v136
  %321 = vmatprep.subr.mxu0 %v133
  %322 = vmatpush2.msra.mxu0 %v132
  %323 = vmatprep.subr.mxu0 %v129
  %324 = vmatpush2.msra.mxu0 %v128
  %325 = vmatprep.mubr.f32.mxu0 0.0
  %326 = vmatmul.mubr.f32.gmra.mxu0 %v58
  %v327 = vpop.f32.mrf.mxu0
  %v328 = vadd.f32 %v42, %v327
  %v329 = vpop.f32.mrf.mxu0
  %v330 = vadd.f32 %v46, %v329
  %331 = vdwg.mxu0
  %v332 = vxor.u32 %v257, 2147483648
  %v333 = vmul.f32 %v332, 1.442695
  %v334 = vpow.pop %v333
  %v335 = vadd.f32 %v334, 1.0
  %v336 = vrcp.pop %v335
  %v337 = vmul.f32 1.0, %v336
  %v338 = vxor.u32 %v259, 2147483648
  %v339 = vmul.f32 %v338, 1.442695
  %v340 = vpow.pop %v339
  %v341 = vadd.f32 %v340, 1.0
  %v342 = vrcp.pop %v341
  %v343 = vmul.f32 1.0, %v342
  %v344 = vtanh.pop %v328
  %v345 = vxor.u32 %v330, 2147483648
  %v346 = vmul.f32 %v345, 1.442695
  %v347 = vpow.pop %v346
  %v348 = vadd.f32 %v347, 1.0
  %v349 = vrcp.pop %v348
  %v350 = vmul.f32 1.0, %v349
  %v351 = vmul.f32 %v343, 0.0
  %v352 = vmul.f32 %v337, %v344
  %v353 = vadd.f32 %v351, %v352
  %v354 = vtanh.pop %v353
  %v355 = vmul.f32 %v350, %v354
  %v356 = vld [vmem:[%s1] sm:$0xff]
  %v357 = vld [vmem:[%s1 + $0x8] sm:$0xff]
  %v358 = vld [vmem:[%s1 + $0x10] sm:$0xff]
  %v359 = vld [vmem:[%s1 + $0x18] sm:$0xff]
  %v360 = vld [vmem:[%s1 + $0x20] sm:$0xff]
  %v361 = vld [vmem:[%s1 + $0x28] sm:$0xff]
  %v362 = vld [vmem:[%s1 + $0x30] sm:$0xff]
  %v363 = vld [vmem:[%s1 + $0x38] sm:$0xff]
  %v364 = vld [vmem:[%s6] sm:$0xff]
  %v365 = vld [vmem:[%s6 + $0x8] sm:$0xff]
  %v366 = vld [vmem:[%s6 + $0x10] sm:$0xff]
  %v367 = vld [vmem:[%s6 + $0x18] sm:$0xff]
  %v368 = vld [vmem:[%s6 + $0x20] sm:$0xff]
  %v369 = vld [vmem:[%s6 + $0x28] sm:$0xff]
  %v370 = vld [vmem:[%s6 + $0x30] sm:$0xff]
  %v371 = vld [vmem:[%s6 + $0x38] sm:$0xff]
  %v372 = vld [vmem:[%s6 + $0x40] sm:$0xff]
  %v373 = vld [vmem:[%s6 + $0x48] sm:$0xff]
  %v374 = vld [vmem:[%s6 + $0x50] sm:$0xff]
  %v375 = vld [vmem:[%s6 + $0x58] sm:$0xff]
  %v376 = vld [vmem:[%s6 + $0x60] sm:$0xff]
  %v377 = vld [vmem:[%s6 + $0x68] sm:$0xff]
  %v378 = vld [vmem:[%s6 + $0x70] sm:$0xff]
  %v379 = vld [vmem:[%s6 + $0x78] sm:$0xff]
  %380 = vmatprep.subr.mxu0 0.0
  %381 = vmatpush1.msra.mxu0 %v379
  %382 = vmatprep.subr.mxu0 0.0
  %383 = vmatpush1.msra.mxu0 %v378
  %384 = vmatprep.subr.mxu0 0.0
  %385 = vmatpush1.msra.mxu0 %v377
  %386 = vmatprep.subr.mxu0 0.0
  %387 = vmatpush1.msra.mxu0 %v376
  %388 = vmatprep.subr.mxu0 0.0
  %389 = vmatpush1.msra.mxu0 %v375
  %390 = vmatprep.subr.mxu0 0.0
  %391 = vmatpush1.msra.mxu0 %v374
  %392 = vmatprep.subr.mxu0 0.0
  %393 = vmatpush1.msra.mxu0 %v373
  %394 = vmatprep.subr.mxu0 0.0
  %395 = vmatpush1.msra.mxu0 %v372
  %396 = vmatprep.subr.mxu0 0.0
  %397 = vmatpush1.msra.mxu0 %v371
  %398 = vmatprep.subr.mxu0 0.0
  %399 = vmatpush1.msra.mxu0 %v370
  %400 = vmatprep.subr.mxu0 0.0
  %401 = vmatpush1.msra.mxu0 %v369
  %402 = vmatprep.subr.mxu0 0.0
  %403 = vmatpush1.msra.mxu0 %v368
  %404 = vmatprep.subr.mxu0 0.0
  %405 = vmatpush1.msra.mxu0 %v367
  %406 = vmatprep.subr.mxu0 0.0
  %407 = vmatpush1.msra.mxu0 %v366
  %408 = vmatprep.subr.mxu0 0.0
  %409 = vmatpush1.msra.mxu0 %v365
  %410 = vmatprep.subr.mxu0 0.0
  %411 = vmatpush1.msra.mxu0 %v364
  %412 = vmatprep.subr.mxu0 0.0
  %413 = vmatpush2.msra.mxu0 0.0
  %414 = vmatprep.subr.mxu0 0.0
  %415 = vmatpush2.msra.mxu0 0.0
  %416 = vmatprep.subr.mxu0 0.0
  %417 = vmatpush2.msra.mxu0 0.0
  %418 = vmatprep.subr.mxu0 0.0
  %419 = vmatpush2.msra.mxu0 0.0
  %420 = vmatprep.subr.mxu0 0.0
  %421 = vmatpush2.msra.mxu0 0.0
  %422 = vmatprep.subr.mxu0 0.0
  %423 = vmatpush2.msra.mxu0 0.0
  %424 = vmatprep.subr.mxu0 0.0
  %425 = vmatpush2.msra.mxu0 0.0
  %426 = vmatprep.subr.mxu0 0.0
  %427 = vmatpush2.msra.mxu0 0.0
  %428 = vmatprep.subr.mxu0 0.0
  %429 = vmatpush2.msra.mxu0 0.0
  %430 = vmatprep.subr.mxu0 0.0
  %431 = vmatpush2.msra.mxu0 0.0
  %432 = vmatprep.subr.mxu0 0.0
  %433 = vmatpush2.msra.mxu0 0.0
  %434 = vmatprep.subr.mxu0 0.0
  %435 = vmatpush2.msra.mxu0 0.0
  %436 = vmatprep.subr.mxu0 0.0
  %437 = vmatpush2.msra.mxu0 0.0
  %438 = vmatprep.subr.mxu0 0.0
  %439 = vmatpush2.msra.mxu0 0.0
  %440 = vmatprep.subr.mxu0 0.0
  %441 = vmatpush2.msra.mxu0 0.0
  %442 = vmatprep.subr.mxu0 0.0
  %443 = vmatpush2.msra.mxu0 0.0
  %444 = vmatprep.mubr.f32.mxu0 0.0
  %445 = vmatmul.mubr.f32.gmra.mxu0 %v355
  %v446 = vpop.f32.mrf.mxu0
  %v447 = vadd.f32 0.0, %v446
  %v448 = vpop.f32.mrf.mxu0
  %449 = vdwg.mxu0
  %v451 = vcombine.high %v447, %v447
  %v453 = vunpack.c.l.s4 1966171168
  %v454 = vunpack.c.0.s8 %v453
  %v455 = vlaneseq
  %v456 = vshrl.u32 %v455, 7
  %v457 = vsub.s32 %v454, %v456
  %v458 = vrot.slane %v447, %v457
  %v460 = vunpack.c.l.s4 1966171168
  %v461 = vunpack.c.0.s8 %v460
  %v462 = vlaneseq
  %v463 = vshrl.u32 %v462, 7
  %v464 = vsub.s32 %v461, %v463
  %v465 = vrot.slane %v451, %v464
  %v466 = vcombine.high %v458, %v458
  %v467 = vcombine.high %v465, %v465
  %v469 = vunpack.c.l.s4 1966171168
  %v470 = vunpack.c.0.s8 %v469
  %v471 = vlaneseq
  %v472 = vshrl.u32 %v471, 7
  %v473 = vsub.s32 %v470, %v472
  %v474 = vrot.slane %v458, %v473
  %v476 = vunpack.c.l.s4 1966171168
  %v477 = vunpack.c.0.s8 %v476
  %v478 = vlaneseq
  %v479 = vshrl.u32 %v478, 7
  %v480 = vsub.s32 %v477, %v479
  %v481 = vrot.slane %v465, %v480
  %v483 = vunpack.c.l.s4 1966171168
  %v484 = vunpack.c.0.s8 %v483
  %v485 = vlaneseq
  %v486 = vshrl.u32 %v485, 7
  %v487 = vsub.s32 %v484, %v486
  %v488 = vrot.slane %v466, %v487
  %v490 = vunpack.c.l.s4 1966171168
  %v491 = vunpack.c.0.s8 %v490
  %v492 = vlaneseq
  %v493 = vshrl.u32 %v492, 7
  %v494 = vsub.s32 %v491, %v493
  %v495 = vrot.slane %v467, %v494
  %v496 = vcombine.high %v474, %v474
  %v497 = vcombine.high %v481, %v481
  %v498 = vcombine.high %v488, %v488
  %v499 = vcombine.high %v495, %v495
  %v500 = vlaneseq
  %v501 = vshrl.u32 %v500, 7
  %v502 = vsub.s32 0, %v501
  %v503 = vrot.slane %v474, %v502
  %v504 = vlaneseq
  %v505 = vshrl.u32 %v504, 7
  %v506 = vsub.s32 0, %v505
  %v507 = vrot.slane %v488, %v506
  %v508 = vlaneseq
  %v509 = vshrl.u32 %v508, 7
  %v510 = vsub.s32 0, %v509
  %v511 = vrot.slane %v496, %v510
  %v512 = vlaneseq
  %v513 = vshrl.u32 %v512, 7
  %v514 = vsub.s32 0, %v513
  %v515 = vrot.slane %v498, %v514
  %v516 = vlaneseq
  %v517 = vshrl.u32 %v516, 7
  %v518 = vsub.s32 0, %v517
  %v519 = vrot.slane %v481, %v518
  %v520 = vlaneseq
  %v521 = vshrl.u32 %v520, 7
  %v522 = vsub.s32 0, %v521
  %v523 = vrot.slane %v495, %v522
  %v524 = vlaneseq
  %v525 = vshrl.u32 %v524, 7
  %v526 = vsub.s32 0, %v525
  %v527 = vrot.slane %v497, %v526
  %v528 = vlaneseq
  %v529 = vshrl.u32 %v528, 7
  %v530 = vsub.s32 0, %v529
  %v531 = vrot.slane %v499, %v530
  %v540 = vadd.f32 %v356, %v503
  %v541 = vadd.f32 %v357, %v507
  %v542 = vadd.f32 %v358, %v511
  %v543 = vadd.f32 %v359, %v515
  %v544 = vadd.f32 %v360, %v519
  %v545 = vadd.f32 %v361, %v523
  %v546 = vadd.f32 %v362, %v527
  %v547 = vadd.f32 %v363, %v531
  %v548 = vtanh.pop %v540
  %v549 = vtanh.pop %v541
  %v550 = vtanh.pop %v542
  %v551 = vtanh.pop %v543
  %v552 = vtanh.pop %v544
  %v553 = vtanh.pop %v545
  %v554 = vtanh.pop %v546
  %v555 = vtanh.pop %v547
  %v556 = vmul.f32 %v548, %v56
  %v557 = vmul.f32 %v549, %v56
  %v558 = vmul.f32 %v550, %v56
  %v559 = vmul.f32 %v551, %v56
  %v560 = vmul.f32 %v552, %v56
  %v561 = vmul.f32 %v553, %v56
  %v562 = vmul.f32 %v554, %v56
  %v563 = vmul.f32 %v555, %v56
  %vm564 = vcmask 261120
  %v565 = vsel %vm564, %v556, 0.0
  %566 = vadd.xlane.f32.xlu0 %v565
  %v567 = vpop.xlane.xlu0 %566
  %v568 = vsel %vm564, %v557, 0.0
  %569 = vadd.xlane.f32.xlu0 %v568
  %v570 = vpop.xlane.xlu0 %569
  %v571 = vsel %vm564, %v558, 0.0
  %572 = vadd.xlane.f32.xlu0 %v571
  %v573 = vpop.xlane.xlu0 %572
  %v574 = vsel %vm564, %v559, 0.0
  %575 = vadd.xlane.f32.xlu0 %v574
  %v576 = vpop.xlane.xlu0 %575
  %v577 = vsel %vm564, %v560, 0.0
  %578 = vadd.xlane.f32.xlu0 %v577
  %v579 = vpop.xlane.xlu0 %578
  %v580 = vsel %vm564, %v561, 0.0
  %581 = vadd.xlane.f32.xlu0 %v580
  %v582 = vpop.xlane.xlu0 %581
  %v583 = vsel %vm564, %v562, 0.0
  %584 = vadd.xlane.f32.xlu0 %v583
  %v585 = vpop.xlane.xlu0 %584
  %v586 = vsel %vm564, %v563, 0.0
  %587 = vadd.xlane.f32.xlu0 %v586
  %v588 = vpop.xlane.xlu0 %587
  %v590 = vlaneseq
  %v591 = vshrl.u32 %v590, 7
  %v592 = vsub.s32 0, %v591
  %v593 = vrot.slane %v59, %v592
  %595 = vbcast.lane.b32.xlu0 %v593, 256
  %v596 = vpop.permute.xlu0 %595
  %v597 = vlaneseq
  %v598 = vshrl.u32 %v597, 7
  %v599 = vsub.s32 1, %v598
  %v600 = vrot.slane %v59, %v599
  %602 = vbcast.lane.b32.xlu0 %v600, 256
  %v603 = vpop.permute.xlu0 %602
  %v604 = vlaneseq
  %v605 = vshrl.u32 %v604, 7
  %v606 = vsub.s32 2, %v605
  %v607 = vrot.slane %v59, %v606
  %609 = vbcast.lane.b32.xlu0 %v607, 256
  %v610 = vpop.permute.xlu0 %609
  %v611 = vlaneseq
  %v612 = vshrl.u32 %v611, 7
  %v613 = vsub.s32 3, %v612
  %v614 = vrot.slane %v59, %v613
  %616 = vbcast.lane.b32.xlu0 %v614, 256
  %v617 = vpop.permute.xlu0 %616
  %v618 = vlaneseq
  %v619 = vshrl.u32 %v618, 7
  %v620 = vsub.s32 4, %v619
  %v621 = vrot.slane %v59, %v620
  %623 = vbcast.lane.b32.xlu0 %v621, 256
  %v624 = vpop.permute.xlu0 %623
  %v625 = vlaneseq
  %v626 = vshrl.u32 %v625, 7
  %v627 = vsub.s32 5, %v626
  %v628 = vrot.slane %v59, %v627
  %630 = vbcast.lane.b32.xlu0 %v628, 256
  %v631 = vpop.permute.xlu0 %630
  %v632 = vlaneseq
  %v633 = vshrl.u32 %v632, 7
  %v634 = vsub.s32 6, %v633
  %v635 = vrot.slane %v59, %v634
  %637 = vbcast.lane.b32.xlu0 %v635, 256
  %v638 = vpop.permute.xlu0 %637
  %v639 = vlaneseq
  %v640 = vshrl.u32 %v639, 7
  %v641 = vsub.s32 7, %v640
  %v642 = vrot.slane %v59, %v641
  %644 = vbcast.lane.b32.xlu0 %v642, 256
  %v645 = vpop.permute.xlu0 %644
  %v654 = vadd.f32 %v567, %v596
  %v655 = vadd.f32 %v570, %v603
  %v656 = vadd.f32 %v573, %v610
  %v657 = vadd.f32 %v576, %v617
  %v658 = vadd.f32 %v579, %v624
  %v659 = vadd.f32 %v582, %v631
  %v660 = vadd.f32 %v585, %v638
  %v661 = vadd.f32 %v588, %v645
  %670 = vset.pattern.permute.xlu0 0
  %671 = vperm.xlu0 %670, %v654
  %v672 = vpop.permute.xlu0 %671
  %673 = vset.pattern.permute.xlu0 0
  %674 = vperm.xlu0 %673, %v655
  %v675 = vpop.permute.xlu0 %674
  %676 = vset.pattern.permute.xlu0 0
  %677 = vperm.xlu0 %676, %v656
  %v678 = vpop.permute.xlu0 %677
  %679 = vset.pattern.permute.xlu0 0
  %680 = vperm.xlu0 %679, %v657
  %v681 = vpop.permute.xlu0 %680
  %682 = vset.pattern.permute.xlu0 0
  %683 = vperm.xlu0 %682, %v658
  %v684 = vpop.permute.xlu0 %683
  %685 = vset.pattern.permute.xlu0 0
  %686 = vperm.xlu0 %685, %v659
  %v687 = vpop.permute.xlu0 %686
  %688 = vset.pattern.permute.xlu0 0
  %689 = vperm.xlu0 %688, %v660
  %v690 = vpop.permute.xlu0 %689
  %691 = vset.pattern.permute.xlu0 0
  %692 = vperm.xlu0 %691, %v661
  %v693 = vpop.permute.xlu0 %692
  %v694 = vlaneseq
  %v695 = vshrl.u32 %v694, 7
  %v696 = vsub.s32 %v61, %v695
  %v697 = vrot.slane %v672, %v696
  %v698 = vlaneseq
  %v699 = vshrl.u32 %v698, 7
  %v700 = vsub.s32 %v61, %v699
  %v701 = vrot.slane %v675, %v700
  %v702 = vlaneseq
  %v703 = vshrl.u32 %v702, 7
  %v704 = vsub.s32 %v61, %v703
  %v705 = vrot.slane %v678, %v704
  %v706 = vlaneseq
  %v707 = vshrl.u32 %v706, 7
  %v708 = vsub.s32 %v61, %v707
  %v709 = vrot.slane %v681, %v708
  %v710 = vlaneseq
  %v711 = vshrl.u32 %v710, 7
  %v712 = vsub.s32 %v61, %v711
  %v713 = vrot.slane %v684, %v712
  %v714 = vlaneseq
  %v715 = vshrl.u32 %v714, 7
  %v716 = vsub.s32 %v61, %v715
  %v717 = vrot.slane %v687, %v716
  %v718 = vlaneseq
  %v719 = vshrl.u32 %v718, 7
  %v720 = vsub.s32 %v61, %v719
  %v721 = vrot.slane %v690, %v720
  %v722 = vlaneseq
  %v723 = vshrl.u32 %v722, 7
  %v724 = vsub.s32 %v61, %v723
  %v725 = vrot.slane %v693, %v724
  %vm726 = vcmask 1041409
  %v727 = vsel %vm726, %v701, %v697
  %vm728 = vcmask 1042434
  %v729 = vsel %vm728, %v705, %v727
  %vm730 = vcmask 1043459
  %v731 = vsel %vm730, %v709, %v729
  %vm732 = vcmask 1044484
  %v733 = vsel %vm732, %v713, %v731
  %vm734 = vcmask 1045509
  %v735 = vsel %vm734, %v717, %v733
  %vm736 = vcmask 1046534
  %v737 = vsel %vm736, %v721, %v735
  %vm738 = vcmask 1047559
  %v739 = vsel %vm738, %v725, %v737
  %vm741 = vcmask 64512
  %v742 = vsel %vm741, %v739, -inf
  %743 = vmax.index.xlane.f32.xlu0 %v742
  %v744 = vpop.xlane.xlu0 %743
  %v745 = vlaneseq
  %v746 = vshrl.u32 %v745, 7
  %v747 = vsub.s32 %v61, %v746
  %v748 = vrot.slane %v744, %v747
  %vm749 = vcmask 57344
  %750 = vst.msk [vmem:[%s8] sm:$0x1] %vm749, %v748
  %vm751 = vcmp.eq.s32.totalorder %v61, %v744
  %v752 = vsel %vm751, -100000.0, %v59
  %v753 = vsel %vm751, 1, 0
  %v754 = vcvt.s32.f32 %v753
  %v755 = vlaneseq
  %v756 = vshrl.u32 %v755, 7
  %v757 = vsub.s32 0, %v756
  %v758 = vrot.slane %v754, %v757
  %760 = vbcast.lane.b32.xlu0 %v758, 256
  %v761 = vpop.permute.xlu0 %760
  %v762 = vlaneseq
  %v763 = vshrl.u32 %v762, 7
  %v764 = vsub.s32 1, %v763
  %v765 = vrot.slane %v754, %v764
  %767 = vbcast.lane.b32.xlu0 %v765, 256
  %v768 = vpop.permute.xlu0 %767
  %v769 = vlaneseq
  %v770 = vshrl.u32 %v769, 7
  %v771 = vsub.s32 2, %v770
  %v772 = vrot.slane %v754, %v771
  %774 = vbcast.lane.b32.xlu0 %v772, 256
  %v775 = vpop.permute.xlu0 %774
  %v776 = vlaneseq
  %v777 = vshrl.u32 %v776, 7
  %v778 = vsub.s32 3, %v777
  %v779 = vrot.slane %v754, %v778
  %781 = vbcast.lane.b32.xlu0 %v779, 256
  %v782 = vpop.permute.xlu0 %781
  %v783 = vlaneseq
  %v784 = vshrl.u32 %v783, 7
  %v785 = vsub.s32 4, %v784
  %v786 = vrot.slane %v754, %v785
  %788 = vbcast.lane.b32.xlu0 %v786, 256
  %v789 = vpop.permute.xlu0 %788
  %v790 = vlaneseq
  %v791 = vshrl.u32 %v790, 7
  %v792 = vsub.s32 5, %v791
  %v793 = vrot.slane %v754, %v792
  %795 = vbcast.lane.b32.xlu0 %v793, 256
  %v796 = vpop.permute.xlu0 %795
  %v797 = vlaneseq
  %v798 = vshrl.u32 %v797, 7
  %v799 = vsub.s32 6, %v798
  %v800 = vrot.slane %v754, %v799
  %802 = vbcast.lane.b32.xlu0 %v800, 256
  %v803 = vpop.permute.xlu0 %802
  %v804 = vlaneseq
  %v805 = vshrl.u32 %v804, 7
  %v806 = vsub.s32 7, %v805
  %v807 = vrot.slane %v754, %v806
  %809 = vbcast.lane.b32.xlu0 %v807, 256
  %v810 = vpop.permute.xlu0 %809
  %v811 = vld [vmem:[%s0] sm:$0xff]
  %v812 = vld [vmem:[%s0 + $0x8] sm:$0xff]
  %v813 = vld [vmem:[%s0 + $0x10] sm:$0xff]
  %v814 = vld [vmem:[%s0 + $0x18] sm:$0xff]
  %v815 = vld [vmem:[%s0 + $0x20] sm:$0xff]
  %v816 = vld [vmem:[%s0 + $0x28] sm:$0xff]
  %v817 = vld [vmem:[%s0 + $0x30] sm:$0xff]
  %v818 = vld [vmem:[%s0 + $0x38] sm:$0xff]
  %v819 = vmul.f32 %v761, %v811
  %v820 = vmul.f32 %v768, %v812
  %v821 = vmul.f32 %v775, %v813
  %v822 = vmul.f32 %v782, %v814
  %v823 = vmul.f32 %v789, %v815
  %v824 = vmul.f32 %v796, %v816
  %v825 = vmul.f32 %v803, %v817
  %v826 = vmul.f32 %v810, %v818
  %v827 = vrot.slane %v819, 4
  %v828 = vadd.f32 %v819, %v827
  %v829 = vrot.slane %v828, 2
  %v830 = vadd.f32 %v828, %v829
  %v831 = vrot.slane %v830, 1
  %v832 = vadd.f32 %v830, %v831
  %v833 = vrot.slane %v820, 4
  %v834 = vadd.f32 %v820, %v833
  %v835 = vrot.slane %v834, 2
  %v836 = vadd.f32 %v834, %v835
  %v837 = vrot.slane %v836, 1
  %v838 = vadd.f32 %v836, %v837
  %v839 = vrot.slane %v821, 4
  %v840 = vadd.f32 %v821, %v839
  %v841 = vrot.slane %v840, 2
  %v842 = vadd.f32 %v840, %v841
  %v843 = vrot.slane %v842, 1
  %v844 = vadd.f32 %v842, %v843
  %v845 = vrot.slane %v822, 4
  %v846 = vadd.f32 %v822, %v845
  %v847 = vrot.slane %v846, 2
  %v848 = vadd.f32 %v846, %v847
  %v849 = vrot.slane %v848, 1
  %v850 = vadd.f32 %v848, %v849
  %v851 = vrot.slane %v823, 4
  %v852 = vadd.f32 %v823, %v851
  %v853 = vrot.slane %v852, 2
  %v854 = vadd.f32 %v852, %v853
  %v855 = vrot.slane %v854, 1
  %v856 = vadd.f32 %v854, %v855
  %v857 = vrot.slane %v824, 4
  %v858 = vadd.f32 %v824, %v857
  %v859 = vrot.slane %v858, 2
  %v860 = vadd.f32 %v858, %v859
  %v861 = vrot.slane %v860, 1
  %v862 = vadd.f32 %v860, %v861
  %v863 = vrot.slane %v825, 4
  %v864 = vadd.f32 %v825, %v863
  %v865 = vrot.slane %v864, 2
  %v866 = vadd.f32 %v864, %v865
  %v867 = vrot.slane %v866, 1
  %v868 = vadd.f32 %v866, %v867
  %v869 = vrot.slane %v826, 4
  %v870 = vadd.f32 %v826, %v869
  %v871 = vrot.slane %v870, 2
  %v872 = vadd.f32 %v870, %v871
  %v873 = vrot.slane %v872, 1
  %v874 = vadd.f32 %v872, %v873
  %v883 = vsel %vm726, %v838, %v832
  %v884 = vsel %vm728, %v844, %v883
  %v885 = vsel %vm730, %v850, %v884
  %v886 = vsel %vm732, %v856, %v885
  %v887 = vsel %vm734, %v862, %v886
  %v888 = vsel %vm736, %v868, %v887
  %v889 = vsel %vm738, %v874, %v888
  %v891 = vld [vmem:[%s4] sm:$0xff]
  %v892 = vld [vmem:[%s4 + $0x8] sm:$0xff]
  %v893 = vld [vmem:[%s4 + $0x10] sm:$0xff]
  %v894 = vld [vmem:[%s4 + $0x18] sm:$0xff]
  %v895 = vld [vmem:[%s4 + $0x20] sm:$0xff]
  %v896 = vld [vmem:[%s4 + $0x28] sm:$0xff]
  %v897 = vld [vmem:[%s4 + $0x30] sm:$0xff]
  %v898 = vld [vmem:[%s4 + $0x38] sm:$0xff]
  %v899 = vld [vmem:[%s4 + $0x40] sm:$0xff]
  %v900 = vld [vmem:[%s4 + $0x48] sm:$0xff]
  %v901 = vld [vmem:[%s4 + $0x50] sm:$0xff]
  %v902 = vld [vmem:[%s4 + $0x58] sm:$0xff]
  %v903 = vld [vmem:[%s4 + $0x60] sm:$0xff]
  %v904 = vld [vmem:[%s4 + $0x68] sm:$0xff]
  %v905 = vld [vmem:[%s4 + $0x70] sm:$0xff]
  %v906 = vld [vmem:[%s4 + $0x78] sm:$0xff]
  %v907 = vld [vmem:[%s4 + $0x80] sm:$0xff]
  %v908 = vld [vmem:[%s4 + $0x88] sm:$0xff]
  %v909 = vld [vmem:[%s4 + $0x90] sm:$0xff]
  %v910 = vld [vmem:[%s4 + $0x98] sm:$0xff]
  %v911 = vld [vmem:[%s4 + $0xa0] sm:$0xff]
  %v912 = vld [vmem:[%s4 + $0xa8] sm:$0xff]
  %v913 = vld [vmem:[%s4 + $0xb0] sm:$0xff]
  %v914 = vld [vmem:[%s4 + $0xb8] sm:$0xff]
  %v915 = vld [vmem:[%s4 + $0xc0] sm:$0xff]
  %v916 = vld [vmem:[%s4 + $0xc8] sm:$0xff]
  %v917 = vld [vmem:[%s4 + $0xd0] sm:$0xff]
  %v918 = vld [vmem:[%s4 + $0xd8] sm:$0xff]
  %v919 = vld [vmem:[%s4 + $0xe0] sm:$0xff]
  %v920 = vld [vmem:[%s4 + $0xe8] sm:$0xff]
  %v921 = vld [vmem:[%s4 + $0xf0] sm:$0xff]
  %v922 = vld [vmem:[%s4 + $0xf8] sm:$0xff]
  %v923 = vld [vmem:[%s4 + $0x100] sm:$0xff]
  %v924 = vld [vmem:[%s4 + $0x108] sm:$0xff]
  %v925 = vld [vmem:[%s4 + $0x110] sm:$0xff]
  %v926 = vld [vmem:[%s4 + $0x118] sm:$0xff]
  %v927 = vld [vmem:[%s4 + $0x120] sm:$0xff]
  %v928 = vld [vmem:[%s4 + $0x128] sm:$0xff]
  %v929 = vld [vmem:[%s4 + $0x130] sm:$0xff]
  %v930 = vld [vmem:[%s4 + $0x138] sm:$0xff]
  %v931 = vld [vmem:[%s4 + $0x140] sm:$0xff]
  %v932 = vld [vmem:[%s4 + $0x148] sm:$0xff]
  %v933 = vld [vmem:[%s4 + $0x150] sm:$0xff]
  %v934 = vld [vmem:[%s4 + $0x158] sm:$0xff]
  %v935 = vld [vmem:[%s4 + $0x160] sm:$0xff]
  %v936 = vld [vmem:[%s4 + $0x168] sm:$0xff]
  %v937 = vld [vmem:[%s4 + $0x170] sm:$0xff]
  %v938 = vld [vmem:[%s4 + $0x178] sm:$0xff]
  %v939 = vld [vmem:[%s4 + $0x180] sm:$0xff]
  %v940 = vld [vmem:[%s4 + $0x188] sm:$0xff]
  %v941 = vld [vmem:[%s4 + $0x190] sm:$0xff]
  %v942 = vld [vmem:[%s4 + $0x198] sm:$0xff]
  %v943 = vld [vmem:[%s4 + $0x1a0] sm:$0xff]
  %v944 = vld [vmem:[%s4 + $0x1a8] sm:$0xff]
  %v945 = vld [vmem:[%s4 + $0x1b0] sm:$0xff]
  %v946 = vld [vmem:[%s4 + $0x1b8] sm:$0xff]
  %v947 = vld [vmem:[%s4 + $0x1c0] sm:$0xff]
  %v948 = vld [vmem:[%s4 + $0x1c8] sm:$0xff]
  %v949 = vld [vmem:[%s4 + $0x1d0] sm:$0xff]
  %v950 = vld [vmem:[%s4 + $0x1d8] sm:$0xff]
  %v951 = vld [vmem:[%s4 + $0x1e0] sm:$0xff]
  %v952 = vld [vmem:[%s4 + $0x1e8] sm:$0xff]
  %v953 = vld [vmem:[%s4 + $0x1f0] sm:$0xff]
  %v954 = vld [vmem:[%s4 + $0x1f8] sm:$0xff]
  %v955 = vld [vmem:[%s4 + $0x200] sm:$0xff]
  %v956 = vld [vmem:[%s4 + $0x208] sm:$0xff]
  %v957 = vld [vmem:[%s4 + $0x210] sm:$0xff]
  %v958 = vld [vmem:[%s4 + $0x218] sm:$0xff]
  %v959 = vld [vmem:[%s4 + $0x220] sm:$0xff]
  %v960 = vld [vmem:[%s4 + $0x228] sm:$0xff]
  %v961 = vld [vmem:[%s4 + $0x230] sm:$0xff]
  %v962 = vld [vmem:[%s4 + $0x238] sm:$0xff]
  %v963 = vld [vmem:[%s4 + $0x240] sm:$0xff]
  %v964 = vld [vmem:[%s4 + $0x248] sm:$0xff]
  %v965 = vld [vmem:[%s4 + $0x250] sm:$0xff]
  %v966 = vld [vmem:[%s4 + $0x258] sm:$0xff]
  %v967 = vld [vmem:[%s4 + $0x260] sm:$0xff]
  %v968 = vld [vmem:[%s4 + $0x268] sm:$0xff]
  %v969 = vld [vmem:[%s4 + $0x270] sm:$0xff]
  %v970 = vld [vmem:[%s4 + $0x278] sm:$0xff]
  %v971 = vld [vmem:[%s4 + $0x280] sm:$0xff]
  %v972 = vld [vmem:[%s4 + $0x288] sm:$0xff]
  %v973 = vld [vmem:[%s4 + $0x290] sm:$0xff]
  %v974 = vld [vmem:[%s4 + $0x298] sm:$0xff]
  %v975 = vld [vmem:[%s4 + $0x2a0] sm:$0xff]
  %v976 = vld [vmem:[%s4 + $0x2a8] sm:$0xff]
  %v977 = vld [vmem:[%s4 + $0x2b0] sm:$0xff]
  %v978 = vld [vmem:[%s4 + $0x2b8] sm:$0xff]
  %v979 = vld [vmem:[%s4 + $0x2c0] sm:$0xff]
  %v980 = vld [vmem:[%s4 + $0x2c8] sm:$0xff]
  %v981 = vld [vmem:[%s4 + $0x2d0] sm:$0xff]
  %v982 = vld [vmem:[%s4 + $0x2d8] sm:$0xff]
  %v983 = vld [vmem:[%s4 + $0x2e0] sm:$0xff]
  %v984 = vld [vmem:[%s4 + $0x2e8] sm:$0xff]
  %v985 = vld [vmem:[%s4 + $0x2f0] sm:$0xff]
  %v986 = vld [vmem:[%s4 + $0x2f8] sm:$0xff]
  %v987 = vld [vmem:[%s4 + $0x300] sm:$0xff]
  %v988 = vld [vmem:[%s4 + $0x308] sm:$0xff]
  %v989 = vld [vmem:[%s4 + $0x310] sm:$0xff]
  %v990 = vld [vmem:[%s4 + $0x318] sm:$0xff]
  %v991 = vld [vmem:[%s4 + $0x320] sm:$0xff]
  %v992 = vld [vmem:[%s4 + $0x328] sm:$0xff]
  %v993 = vld [vmem:[%s4 + $0x330] sm:$0xff]
  %v994 = vld [vmem:[%s4 + $0x338] sm:$0xff]
  %v995 = vld [vmem:[%s4 + $0x340] sm:$0xff]
  %v996 = vld [vmem:[%s4 + $0x348] sm:$0xff]
  %v997 = vld [vmem:[%s4 + $0x350] sm:$0xff]
  %v998 = vld [vmem:[%s4 + $0x358] sm:$0xff]
  %v999 = vld [vmem:[%s4 + $0x360] sm:$0xff]
  %v1000 = vld [vmem:[%s4 + $0x368] sm:$0xff]
  %v1001 = vld [vmem:[%s4 + $0x370] sm:$0xff]
  %v1002 = vld [vmem:[%s4 + $0x378] sm:$0xff]
  %v1003 = vld [vmem:[%s4 + $0x380] sm:$0xff]
  %v1004 = vld [vmem:[%s4 + $0x388] sm:$0xff]
  %v1005 = vld [vmem:[%s4 + $0x390] sm:$0xff]
  %v1006 = vld [vmem:[%s4 + $0x398] sm:$0xff]
  %v1007 = vld [vmem:[%s4 + $0x3a0] sm:$0xff]
  %v1008 = vld [vmem:[%s4 + $0x3a8] sm:$0xff]
  %v1009 = vld [vmem:[%s4 + $0x3b0] sm:$0xff]
  %v1010 = vld [vmem:[%s4 + $0x3b8] sm:$0xff]
  %v1011 = vld [vmem:[%s4 + $0x3c0] sm:$0xff]
  %v1012 = vld [vmem:[%s4 + $0x3c8] sm:$0xff]
  %v1013 = vld [vmem:[%s4 + $0x3d0] sm:$0xff]
  %v1014 = vld [vmem:[%s4 + $0x3d8] sm:$0xff]
  %v1015 = vld [vmem:[%s4 + $0x3e0] sm:$0xff]
  %v1016 = vld [vmem:[%s4 + $0x3e8] sm:$0xff]
  %v1017 = vld [vmem:[%s4 + $0x3f0] sm:$0xff]
  %v1018 = vld [vmem:[%s4 + $0x3f8] sm:$0xff]
  %1019 = vmatprep.subr.mxu0 %v952
  %1020 = vmatpush1.msra.mxu0 %v951
  %1021 = vmatprep.subr.mxu0 %v948
  %1022 = vmatpush1.msra.mxu0 %v947
  %1023 = vmatprep.subr.mxu0 %v944
  %1024 = vmatpush1.msra.mxu0 %v943
  %1025 = vmatprep.subr.mxu0 %v940
  %1026 = vmatpush1.msra.mxu0 %v939
  %1027 = vmatprep.subr.mxu0 %v936
  %1028 = vmatpush1.msra.mxu0 %v935
  %1029 = vmatprep.subr.mxu0 %v932
  %1030 = vmatpush1.msra.mxu0 %v931
  %1031 = vmatprep.subr.mxu0 %v928
  %1032 = vmatpush1.msra.mxu0 %v927
  %1033 = vmatprep.subr.mxu0 %v924
  %1034 = vmatpush1.msra.mxu0 %v923
  %1035 = vmatprep.subr.mxu0 %v920
  %1036 = vmatpush1.msra.mxu0 %v919
  %1037 = vmatprep.subr.mxu0 %v916
  %1038 = vmatpush1.msra.mxu0 %v915
  %1039 = vmatprep.subr.mxu0 %v912
  %1040 = vmatpush1.msra.mxu0 %v911
  %1041 = vmatprep.subr.mxu0 %v908
  %1042 = vmatpush1.msra.mxu0 %v907
  %1043 = vmatprep.subr.mxu0 %v904
  %1044 = vmatpush1.msra.mxu0 %v903
  %1045 = vmatprep.subr.mxu0 %v900
  %1046 = vmatpush1.msra.mxu0 %v899
  %1047 = vmatprep.subr.mxu0 %v896
  %1048 = vmatpush1.msra.mxu0 %v895
  %1049 = vmatprep.subr.mxu0 %v892
  %1050 = vmatpush1.msra.mxu0 %v891
  %1051 = vmatprep.subr.mxu0 %v1016
  %1052 = vmatpush2.msra.mxu0 %v1015
  %1053 = vmatprep.subr.mxu0 %v1012
  %1054 = vmatpush2.msra.mxu0 %v1011
  %1055 = vmatprep.subr.mxu0 %v1008
  %1056 = vmatpush2.msra.mxu0 %v1007
  %1057 = vmatprep.subr.mxu0 %v1004
  %1058 = vmatpush2.msra.mxu0 %v1003
  %1059 = vmatprep.subr.mxu0 %v1000
  %1060 = vmatpush2.msra.mxu0 %v999
  %1061 = vmatprep.subr.mxu0 %v996
  %1062 = vmatpush2.msra.mxu0 %v995
  %1063 = vmatprep.subr.mxu0 %v992
  %1064 = vmatpush2.msra.mxu0 %v991
  %1065 = vmatprep.subr.mxu0 %v988
  %1066 = vmatpush2.msra.mxu0 %v987
  %1067 = vmatprep.subr.mxu0 %v984
  %1068 = vmatpush2.msra.mxu0 %v983
  %1069 = vmatprep.subr.mxu0 %v980
  %1070 = vmatpush2.msra.mxu0 %v979
  %1071 = vmatprep.subr.mxu0 %v976
  %1072 = vmatpush2.msra.mxu0 %v975
  %1073 = vmatprep.subr.mxu0 %v972
  %1074 = vmatpush2.msra.mxu0 %v971
  %1075 = vmatprep.subr.mxu0 %v968
  %1076 = vmatpush2.msra.mxu0 %v967
  %1077 = vmatprep.subr.mxu0 %v964
  %1078 = vmatpush2.msra.mxu0 %v963
  %1079 = vmatprep.subr.mxu0 %v960
  %1080 = vmatpush2.msra.mxu0 %v959
  %1081 = vmatprep.subr.mxu0 %v956
  %1082 = vmatpush2.msra.mxu0 %v955
  %1083 = vmatprep.mubr.f32.mxu0 %v355
  %1084 = vmatmul.mubr.f32.gmra.mxu0 %v889
  %v1085 = vpop.f32.mrf.mxu0
  %v1086 = vadd.f32 %v34, %v1085
  %v1087 = vpop.f32.mrf.mxu0
  %v1088 = vadd.f32 %v38, %v1087
  %1089 = vdwg.mxu0
  %1090 = vmatprep.subr.mxu0 %v954
  %1091 = vmatpush1.msra.mxu0 %v953
  %1092 = vmatprep.subr.mxu0 %v950
  %1093 = vmatpush1.msra.mxu0 %v949
  %1094 = vmatprep.subr.mxu0 %v946
  %1095 = vmatpush1.msra.mxu0 %v945
  %1096 = vmatprep.subr.mxu0 %v942
  %1097 = vmatpush1.msra.mxu0 %v941
  %1098 = vmatprep.subr.mxu0 %v938
  %1099 = vmatpush1.msra.mxu0 %v937
  %1100 = vmatprep.subr.mxu0 %v934
  %1101 = vmatpush1.msra.mxu0 %v933
  %1102 = vmatprep.subr.mxu0 %v930
  %1103 = vmatpush1.msra.mxu0 %v929
  %1104 = vmatprep.subr.mxu0 %v926
  %1105 = vmatpush1.msra.mxu0 %v925
  %1106 = vmatprep.subr.mxu0 %v922
  %1107 = vmatpush1.msra.mxu0 %v921
  %1108 = vmatprep.subr.mxu0 %v918
  %1109 = vmatpush1.msra.mxu0 %v917
  %1110 = vmatprep.subr.mxu0 %v914
  %1111 = vmatpush1.msra.mxu0 %v913
  %1112 = vmatprep.subr.mxu0 %v910
  %1113 = vmatpush1.msra.mxu0 %v909
  %1114 = vmatprep.subr.mxu0 %v906
  %1115 = vmatpush1.msra.mxu0 %v905
  %1116 = vmatprep.subr.mxu0 %v902
  %1117 = vmatpush1.msra.mxu0 %v901
  %1118 = vmatprep.subr.mxu0 %v898
  %1119 = vmatpush1.msra.mxu0 %v897
  %1120 = vmatprep.subr.mxu0 %v894
  %1121 = vmatpush1.msra.mxu0 %v893
  %1122 = vmatprep.subr.mxu0 %v1018
  %1123 = vmatpush2.msra.mxu0 %v1017
  %1124 = vmatprep.subr.mxu0 %v1014
  %1125 = vmatpush2.msra.mxu0 %v1013
  %1126 = vmatprep.subr.mxu0 %v1010
  %1127 = vmatpush2.msra.mxu0 %v1009
  %1128 = vmatprep.subr.mxu0 %v1006
  %1129 = vmatpush2.msra.mxu0 %v1005
  %1130 = vmatprep.subr.mxu0 %v1002
  %1131 = vmatpush2.msra.mxu0 %v1001
  %1132 = vmatprep.subr.mxu0 %v998
  %1133 = vmatpush2.msra.mxu0 %v997
  %1134 = vmatprep.subr.mxu0 %v994
  %1135 = vmatpush2.msra.mxu0 %v993
  %1136 = vmatprep.subr.mxu0 %v990
  %1137 = vmatpush2.msra.mxu0 %v989
  %1138 = vmatprep.subr.mxu0 %v986
  %1139 = vmatpush2.msra.mxu0 %v985
  %1140 = vmatprep.subr.mxu0 %v982
  %1141 = vmatpush2.msra.mxu0 %v981
  %1142 = vmatprep.subr.mxu0 %v978
  %1143 = vmatpush2.msra.mxu0 %v977
  %1144 = vmatprep.subr.mxu0 %v974
  %1145 = vmatpush2.msra.mxu0 %v973
  %1146 = vmatprep.subr.mxu0 %v970
  %1147 = vmatpush2.msra.mxu0 %v969
  %1148 = vmatprep.subr.mxu0 %v966
  %1149 = vmatpush2.msra.mxu0 %v965
  %1150 = vmatprep.subr.mxu0 %v962
  %1151 = vmatpush2.msra.mxu0 %v961
  %1152 = vmatprep.subr.mxu0 %v958
  %1153 = vmatpush2.msra.mxu0 %v957
  %1154 = vmatprep.mubr.f32.mxu0 %v355
  %1155 = vmatmul.mubr.f32.gmra.mxu0 %v889
  %v1156 = vpop.f32.mrf.mxu0
  %v1157 = vadd.f32 %v42, %v1156
  %v1158 = vpop.f32.mrf.mxu0
  %v1159 = vadd.f32 %v46, %v1158
  %1160 = vdwg.mxu0
  %v1161 = vxor.u32 %v1086, 2147483648
  %v1162 = vmul.f32 %v1161, 1.442695
  %v1163 = vpow.pop %v1162
  %v1164 = vadd.f32 %v1163, 1.0
  %v1165 = vrcp.pop %v1164
  %v1166 = vmul.f32 1.0, %v1165
  %v1167 = vxor.u32 %v1088, 2147483648
  %v1168 = vmul.f32 %v1167, 1.442695
  %v1169 = vpow.pop %v1168
  %v1170 = vadd.f32 %v1169, 1.0
  %v1171 = vrcp.pop %v1170
  %v1172 = vmul.f32 1.0, %v1171
  %v1173 = vtanh.pop %v1157
  %v1174 = vxor.u32 %v1159, 2147483648
  %v1175 = vmul.f32 %v1174, 1.442695
  %v1176 = vpow.pop %v1175
  %v1177 = vadd.f32 %v1176, 1.0
  %v1178 = vrcp.pop %v1177
  %v1179 = vmul.f32 1.0, %v1178
  %v1180 = vmul.f32 %v1172, %v353
  %v1181 = vmul.f32 %v1166, %v1173
  %v1182 = vadd.f32 %v1180, %v1181
  %v1183 = vtanh.pop %v1182
  %v1184 = vmul.f32 %v1179, %v1183
  %v1185 = vld [vmem:[%s1] sm:$0xff]
  %v1186 = vld [vmem:[%s1 + $0x8] sm:$0xff]
  %v1187 = vld [vmem:[%s1 + $0x10] sm:$0xff]
  %v1188 = vld [vmem:[%s1 + $0x18] sm:$0xff]
  %v1189 = vld [vmem:[%s1 + $0x20] sm:$0xff]
  %v1190 = vld [vmem:[%s1 + $0x28] sm:$0xff]
  %v1191 = vld [vmem:[%s1 + $0x30] sm:$0xff]
  %v1192 = vld [vmem:[%s1 + $0x38] sm:$0xff]
  %v1193 = vld [vmem:[%s6] sm:$0xff]
  %v1194 = vld [vmem:[%s6 + $0x8] sm:$0xff]
  %v1195 = vld [vmem:[%s6 + $0x10] sm:$0xff]
  %v1196 = vld [vmem:[%s6 + $0x18] sm:$0xff]
  %v1197 = vld [vmem:[%s6 + $0x20] sm:$0xff]
  %v1198 = vld [vmem:[%s6 + $0x28] sm:$0xff]
  %v1199 = vld [vmem:[%s6 + $0x30] sm:$0xff]
  %v1200 = vld [vmem:[%s6 + $0x38] sm:$0xff]
  %v1201 = vld [vmem:[%s6 + $0x40] sm:$0xff]
  %v1202 = vld [vmem:[%s6 + $0x48] sm:$0xff]
  %v1203 = vld [vmem:[%s6 + $0x50] sm:$0xff]
  %v1204 = vld [vmem:[%s6 + $0x58] sm:$0xff]
  %v1205 = vld [vmem:[%s6 + $0x60] sm:$0xff]
  %v1206 = vld [vmem:[%s6 + $0x68] sm:$0xff]
  %v1207 = vld [vmem:[%s6 + $0x70] sm:$0xff]
  %v1208 = vld [vmem:[%s6 + $0x78] sm:$0xff]
  %1209 = vmatprep.subr.mxu0 0.0
  %1210 = vmatpush1.msra.mxu0 %v1208
  %1211 = vmatprep.subr.mxu0 0.0
  %1212 = vmatpush1.msra.mxu0 %v1207
  %1213 = vmatprep.subr.mxu0 0.0
  %1214 = vmatpush1.msra.mxu0 %v1206
  %1215 = vmatprep.subr.mxu0 0.0
  %1216 = vmatpush1.msra.mxu0 %v1205
  %1217 = vmatprep.subr.mxu0 0.0
  %1218 = vmatpush1.msra.mxu0 %v1204
  %1219 = vmatprep.subr.mxu0 0.0
  %1220 = vmatpush1.msra.mxu0 %v1203
  %1221 = vmatprep.subr.mxu0 0.0
  %1222 = vmatpush1.msra.mxu0 %v1202
  %1223 = vmatprep.subr.mxu0 0.0
  %1224 = vmatpush1.msra.mxu0 %v1201
  %1225 = vmatprep.subr.mxu0 0.0
  %1226 = vmatpush1.msra.mxu0 %v1200
  %1227 = vmatprep.subr.mxu0 0.0
  %1228 = vmatpush1.msra.mxu0 %v1199
  %1229 = vmatprep.subr.mxu0 0.0
  %1230 = vmatpush1.msra.mxu0 %v1198
  %1231 = vmatprep.subr.mxu0 0.0
  %1232 = vmatpush1.msra.mxu0 %v1197
  %1233 = vmatprep.subr.mxu0 0.0
  %1234 = vmatpush1.msra.mxu0 %v1196
  %1235 = vmatprep.subr.mxu0 0.0
  %1236 = vmatpush1.msra.mxu0 %v1195
  %1237 = vmatprep.subr.mxu0 0.0
  %1238 = vmatpush1.msra.mxu0 %v1194
  %1239 = vmatprep.subr.mxu0 0.0
  %1240 = vmatpush1.msra.mxu0 %v1193
  %1241 = vmatprep.subr.mxu0 0.0
  %1242 = vmatpush2.msra.mxu0 0.0
  %1243 = vmatprep.subr.mxu0 0.0
  %1244 = vmatpush2.msra.mxu0 0.0
  %1245 = vmatprep.subr.mxu0 0.0
  %1246 = vmatpush2.msra.mxu0 0.0
  %1247 = vmatprep.subr.mxu0 0.0
  %1248 = vmatpush2.msra.mxu0 0.0
  %1249 = vmatprep.subr.mxu0 0.0
  %1250 = vmatpush2.msra.mxu0 0.0
  %1251 = vmatprep.subr.mxu0 0.0
  %1252 = vmatpush2.msra.mxu0 0.0
  %1253 = vmatprep.subr.mxu0 0.0
  %1254 = vmatpush2.msra.mxu0 0.0
  %1255 = vmatprep.subr.mxu0 0.0
  %1256 = vmatpush2.msra.mxu0 0.0
  %1257 = vmatprep.subr.mxu0 0.0
  %1258 = vmatpush2.msra.mxu0 0.0
  %1259 = vmatprep.subr.mxu0 0.0
  %1260 = vmatpush2.msra.mxu0 0.0
  %1261 = vmatprep.subr.mxu0 0.0
  %1262 = vmatpush2.msra.mxu0 0.0
  %1263 = vmatprep.subr.mxu0 0.0
  %1264 = vmatpush2.msra.mxu0 0.0
  %1265 = vmatprep.subr.mxu0 0.0
  %1266 = vmatpush2.msra.mxu0 0.0
  %1267 = vmatprep.subr.mxu0 0.0
  %1268 = vmatpush2.msra.mxu0 0.0
  %1269 = vmatprep.subr.mxu0 0.0
  %1270 = vmatpush2.msra.mxu0 0.0
  %1271 = vmatprep.subr.mxu0 0.0
  %1272 = vmatpush2.msra.mxu0 0.0
  %1273 = vmatprep.mubr.f32.mxu0 0.0
  %1274 = vmatmul.mubr.f32.gmra.mxu0 %v1184
  %v1275 = vpop.f32.mrf.mxu0
  %v1276 = vadd.f32 0.0, %v1275
  %v1277 = vpop.f32.mrf.mxu0
  %1278 = vdwg.mxu0
  %v1280 = vcombine.high %v1276, %v1276
  %v1282 = vunpack.c.l.s4 1966171168
  %v1283 = vunpack.c.0.s8 %v1282
  %v1284 = vlaneseq
  %v1285 = vshrl.u32 %v1284, 7
  %v1286 = vsub.s32 %v1283, %v1285
  %v1287 = vrot.slane %v1276, %v1286
  %v1289 = vunpack.c.l.s4 1966171168
  %v1290 = vunpack.c.0.s8 %v1289
  %v1291 = vlaneseq
  %v1292 = vshrl.u32 %v1291, 7
  %v1293 = vsub.s32 %v1290, %v1292
  %v1294 = vrot.slane %v1280, %v1293
  %v1295 = vcombine.high %v1287, %v1287
  %v1296 = vcombine.high %v1294, %v1294
  %v1298 = vunpack.c.l.s4 1966171168
  %v1299 = vunpack.c.0.s8 %v1298
  %v1300 = vlaneseq
  %v1301 = vshrl.u32 %v1300, 7
  %v1302 = vsub.s32 %v1299, %v1301
  %v1303 = vrot.slane %v1287, %v1302
  %v1305 = vunpack.c.l.s4 1966171168
  %v1306 = vunpack.c.0.s8 %v1305
  %v1307 = vlaneseq
  %v1308 = vshrl.u32 %v1307, 7
  %v1309 = vsub.s32 %v1306, %v1308
  %v1310 = vrot.slane %v1294, %v1309
  %v1312 = vunpack.c.l.s4 1966171168
  %v1313 = vunpack.c.0.s8 %v1312
  %v1314 = vlaneseq
  %v1315 = vshrl.u32 %v1314, 7
  %v1316 = vsub.s32 %v1313, %v1315
  %v1317 = vrot.slane %v1295, %v1316
  %v1319 = vunpack.c.l.s4 1966171168
  %v1320 = vunpack.c.0.s8 %v1319
  %v1321 = vlaneseq
  %v1322 = vshrl.u32 %v1321, 7
  %v1323 = vsub.s32 %v1320, %v1322
  %v1324 = vrot.slane %v1296, %v1323
  %v1325 = vcombine.high %v1303, %v1303
  %v1326 = vcombine.high %v1310, %v1310
  %v1327 = vcombine.high %v1317, %v1317
  %v1328 = vcombine.high %v1324, %v1324
  %v1329 = vlaneseq
  %v1330 = vshrl.u32 %v1329, 7
  %v1331 = vsub.s32 0, %v1330
  %v1332 = vrot.slane %v1303, %v1331
  %v1333 = vlaneseq
  %v1334 = vshrl.u32 %v1333, 7
  %v1335 = vsub.s32 0, %v1334
  %v1336 = vrot.slane %v1317, %v1335
  %v1337 = vlaneseq
  %v1338 = vshrl.u32 %v1337, 7
  %v1339 = vsub.s32 0, %v1338
  %v1340 = vrot.slane %v1325, %v1339
  %v1341 = vlaneseq
  %v1342 = vshrl.u32 %v1341, 7
  %v1343 = vsub.s32 0, %v1342
  %v1344 = vrot.slane %v1327, %v1343
  %v1345 = vlaneseq
  %v1346 = vshrl.u32 %v1345, 7
  %v1347 = vsub.s32 0, %v1346
  %v1348 = vrot.slane %v1310, %v1347
  %v1349 = vlaneseq
  %v1350 = vshrl.u32 %v1349, 7
  %v1351 = vsub.s32 0, %v1350
  %v1352 = vrot.slane %v1324, %v1351
  %v1353 = vlaneseq
  %v1354 = vshrl.u32 %v1353, 7
  %v1355 = vsub.s32 0, %v1354
  %v1356 = vrot.slane %v1326, %v1355
  %v1357 = vlaneseq
  %v1358 = vshrl.u32 %v1357, 7
  %v1359 = vsub.s32 0, %v1358
  %v1360 = vrot.slane %v1328, %v1359
  %v1369 = vadd.f32 %v1185, %v1332
  %v1370 = vadd.f32 %v1186, %v1336
  %v1371 = vadd.f32 %v1187, %v1340
  %v1372 = vadd.f32 %v1188, %v1344
  %v1373 = vadd.f32 %v1189, %v1348
  %v1374 = vadd.f32 %v1190, %v1352
  %v1375 = vadd.f32 %v1191, %v1356
  %v1376 = vadd.f32 %v1192, %v1360
  %v1377 = vtanh.pop %v1369
  %v1378 = vtanh.pop %v1370
  %v1379 = vtanh.pop %v1371
  %v1380 = vtanh.pop %v1372
  %v1381 = vtanh.pop %v1373
  %v1382 = vtanh.pop %v1374
  %v1383 = vtanh.pop %v1375
  %v1384 = vtanh.pop %v1376
  %v1385 = vmul.f32 %v1377, %v56
  %v1386 = vmul.f32 %v1378, %v56
  %v1387 = vmul.f32 %v1379, %v56
  %v1388 = vmul.f32 %v1380, %v56
  %v1389 = vmul.f32 %v1381, %v56
  %v1390 = vmul.f32 %v1382, %v56
  %v1391 = vmul.f32 %v1383, %v56
  %v1392 = vmul.f32 %v1384, %v56
  %v1393 = vsel %vm564, %v1385, 0.0
  %1394 = vadd.xlane.f32.xlu0 %v1393
  %v1395 = vpop.xlane.xlu0 %1394
  %v1396 = vsel %vm564, %v1386, 0.0
  %1397 = vadd.xlane.f32.xlu0 %v1396
  %v1398 = vpop.xlane.xlu0 %1397
  %v1399 = vsel %vm564, %v1387, 0.0
  %1400 = vadd.xlane.f32.xlu0 %v1399
  %v1401 = vpop.xlane.xlu0 %1400
  %v1402 = vsel %vm564, %v1388, 0.0
  %1403 = vadd.xlane.f32.xlu0 %v1402
  %v1404 = vpop.xlane.xlu0 %1403
  %v1405 = vsel %vm564, %v1389, 0.0
  %1406 = vadd.xlane.f32.xlu0 %v1405
  %v1407 = vpop.xlane.xlu0 %1406
  %v1408 = vsel %vm564, %v1390, 0.0
  %1409 = vadd.xlane.f32.xlu0 %v1408
  %v1410 = vpop.xlane.xlu0 %1409
  %v1411 = vsel %vm564, %v1391, 0.0
  %1412 = vadd.xlane.f32.xlu0 %v1411
  %v1413 = vpop.xlane.xlu0 %1412
  %v1414 = vsel %vm564, %v1392, 0.0
  %1415 = vadd.xlane.f32.xlu0 %v1414
  %v1416 = vpop.xlane.xlu0 %1415
  %v1418 = vlaneseq
  %v1419 = vshrl.u32 %v1418, 7
  %v1420 = vsub.s32 0, %v1419
  %v1421 = vrot.slane %v752, %v1420
  %1423 = vbcast.lane.b32.xlu0 %v1421, 256
  %v1424 = vpop.permute.xlu0 %1423
  %v1425 = vlaneseq
  %v1426 = vshrl.u32 %v1425, 7
  %v1427 = vsub.s32 1, %v1426
  %v1428 = vrot.slane %v752, %v1427
  %1430 = vbcast.lane.b32.xlu0 %v1428, 256
  %v1431 = vpop.permute.xlu0 %1430
  %v1432 = vlaneseq
  %v1433 = vshrl.u32 %v1432, 7
  %v1434 = vsub.s32 2, %v1433
  %v1435 = vrot.slane %v752, %v1434
  %1437 = vbcast.lane.b32.xlu0 %v1435, 256
  %v1438 = vpop.permute.xlu0 %1437
  %v1439 = vlaneseq
  %v1440 = vshrl.u32 %v1439, 7
  %v1441 = vsub.s32 3, %v1440
  %v1442 = vrot.slane %v752, %v1441
  %1444 = vbcast.lane.b32.xlu0 %v1442, 256
  %v1445 = vpop.permute.xlu0 %1444
  %v1446 = vlaneseq
  %v1447 = vshrl.u32 %v1446, 7
  %v1448 = vsub.s32 4, %v1447
  %v1449 = vrot.slane %v752, %v1448
  %1451 = vbcast.lane.b32.xlu0 %v1449, 256
  %v1452 = vpop.permute.xlu0 %1451
  %v1453 = vlaneseq
  %v1454 = vshrl.u32 %v1453, 7
  %v1455 = vsub.s32 5, %v1454
  %v1456 = vrot.slane %v752, %v1455
  %1458 = vbcast.lane.b32.xlu0 %v1456, 256
  %v1459 = vpop.permute.xlu0 %1458
  %v1460 = vlaneseq
  %v1461 = vshrl.u32 %v1460, 7
  %v1462 = vsub.s32 6, %v1461
  %v1463 = vrot.slane %v752, %v1462
  %1465 = vbcast.lane.b32.xlu0 %v1463, 256
  %v1466 = vpop.permute.xlu0 %1465
  %v1467 = vlaneseq
  %v1468 = vshrl.u32 %v1467, 7
  %v1469 = vsub.s32 7, %v1468
  %v1470 = vrot.slane %v752, %v1469
  %1472 = vbcast.lane.b32.xlu0 %v1470, 256
  %v1473 = vpop.permute.xlu0 %1472
  %v1482 = vadd.f32 %v1395, %v1424
  %v1483 = vadd.f32 %v1398, %v1431
  %v1484 = vadd.f32 %v1401, %v1438
  %v1485 = vadd.f32 %v1404, %v1445
  %v1486 = vadd.f32 %v1407, %v1452
  %v1487 = vadd.f32 %v1410, %v1459
  %v1488 = vadd.f32 %v1413, %v1466
  %v1489 = vadd.f32 %v1416, %v1473
  %1498 = vset.pattern.permute.xlu0 0
  %1499 = vperm.xlu0 %1498, %v1482
  %v1500 = vpop.permute.xlu0 %1499
  %1501 = vset.pattern.permute.xlu0 0
  %1502 = vperm.xlu0 %1501, %v1483
  %v1503 = vpop.permute.xlu0 %1502
  %1504 = vset.pattern.permute.xlu0 0
  %1505 = vperm.xlu0 %1504, %v1484
  %v1506 = vpop.permute.xlu0 %1505
  %1507 = vset.pattern.permute.xlu0 0
  %1508 = vperm.xlu0 %1507, %v1485
  %v1509 = vpop.permute.xlu0 %1508
  %1510 = vset.pattern.permute.xlu0 0
  %1511 = vperm.xlu0 %1510, %v1486
  %v1512 = vpop.permute.xlu0 %1511
  %1513 = vset.pattern.permute.xlu0 0
  %1514 = vperm.xlu0 %1513, %v1487
  %v1515 = vpop.permute.xlu0 %1514
  %1516 = vset.pattern.permute.xlu0 0
  %1517 = vperm.xlu0 %1516, %v1488
  %v1518 = vpop.permute.xlu0 %1517
  %1519 = vset.pattern.permute.xlu0 0
  %1520 = vperm.xlu0 %1519, %v1489
  %v1521 = vpop.permute.xlu0 %1520
  %v1522 = vlaneseq
  %v1523 = vshrl.u32 %v1522, 7
  %v1524 = vsub.s32 %v61, %v1523
  %v1525 = vrot.slane %v1500, %v1524
  %v1526 = vlaneseq
  %v1527 = vshrl.u32 %v1526, 7
  %v1528 = vsub.s32 %v61, %v1527
  %v1529 = vrot.slane %v1503, %v1528
  %v1530 = vlaneseq
  %v1531 = vshrl.u32 %v1530, 7
  %v1532 = vsub.s32 %v61, %v1531
  %v1533 = vrot.slane %v1506, %v1532
  %v1534 = vlaneseq
  %v1535 = vshrl.u32 %v1534, 7
  %v1536 = vsub.s32 %v61, %v1535
  %v1537 = vrot.slane %v1509, %v1536
  %v1538 = vlaneseq
  %v1539 = vshrl.u32 %v1538, 7
  %v1540 = vsub.s32 %v61, %v1539
  %v1541 = vrot.slane %v1512, %v1540
  %v1542 = vlaneseq
  %v1543 = vshrl.u32 %v1542, 7
  %v1544 = vsub.s32 %v61, %v1543
  %v1545 = vrot.slane %v1515, %v1544
  %v1546 = vlaneseq
  %v1547 = vshrl.u32 %v1546, 7
  %v1548 = vsub.s32 %v61, %v1547
  %v1549 = vrot.slane %v1518, %v1548
  %v1550 = vlaneseq
  %v1551 = vshrl.u32 %v1550, 7
  %v1552 = vsub.s32 %v61, %v1551
  %v1553 = vrot.slane %v1521, %v1552
  %v1554 = vsel %vm726, %v1529, %v1525
  %v1555 = vsel %vm728, %v1533, %v1554
  %v1556 = vsel %vm730, %v1537, %v1555
  %v1557 = vsel %vm732, %v1541, %v1556
  %v1558 = vsel %vm734, %v1545, %v1557
  %v1559 = vsel %vm736, %v1549, %v1558
  %v1560 = vsel %vm738, %v1553, %v1559
  %v1562 = vsel %vm741, %v1560, -inf
  %1563 = vmax.index.xlane.f32.xlu0 %v1562
  %v1564 = vpop.xlane.xlu0 %1563
  %v1565 = vlaneseq
  %v1566 = vshrl.u32 %v1565, 7
  %v1567 = vsub.s32 %v61, %v1566
  %v1568 = vrot.slane %v1564, %v1567
  %1569 = vst.msk [vmem:[%s8 + $0x1] sm:$0x1] %vm749, %v1568
  %vm1570 = vcmp.eq.s32.totalorder %v61, %v1564
  %v1571 = vsel %vm1570, -100000.0, %v752
  %v1572 = vsel %vm1570, 1, 0
  %v1573 = vcvt.s32.f32 %v1572
  %v1574 = vlaneseq
  %v1575 = vshrl.u32 %v1574, 7
  %v1576 = vsub.s32 0, %v1575
  %v1577 = vrot.slane %v1573, %v1576
  %1579 = vbcast.lane.b32.xlu0 %v1577, 256
  %v1580 = vpop.permute.xlu0 %1579
  %v1581 = vlaneseq
  %v1582 = vshrl.u32 %v1581, 7
  %v1583 = vsub.s32 1, %v1582
  %v1584 = vrot.slane %v1573, %v1583
  %1586 = vbcast.lane.b32.xlu0 %v1584, 256
  %v1587 = vpop.permute.xlu0 %1586
  %v1588 = vlaneseq
  %v1589 = vshrl.u32 %v1588, 7
  %v1590 = vsub.s32 2, %v1589
  %v1591 = vrot.slane %v1573, %v1590
  %1593 = vbcast.lane.b32.xlu0 %v1591, 256
  %v1594 = vpop.permute.xlu0 %1593
  %v1595 = vlaneseq
  %v1596 = vshrl.u32 %v1595, 7
  %v1597 = vsub.s32 3, %v1596
  %v1598 = vrot.slane %v1573, %v1597
  %1600 = vbcast.lane.b32.xlu0 %v1598, 256
  %v1601 = vpop.permute.xlu0 %1600
  %v1602 = vlaneseq
  %v1603 = vshrl.u32 %v1602, 7
  %v1604 = vsub.s32 4, %v1603
  %v1605 = vrot.slane %v1573, %v1604
  %1607 = vbcast.lane.b32.xlu0 %v1605, 256
  %v1608 = vpop.permute.xlu0 %1607
  %v1609 = vlaneseq
  %v1610 = vshrl.u32 %v1609, 7
  %v1611 = vsub.s32 5, %v1610
  %v1612 = vrot.slane %v1573, %v1611
  %1614 = vbcast.lane.b32.xlu0 %v1612, 256
  %v1615 = vpop.permute.xlu0 %1614
  %v1616 = vlaneseq
  %v1617 = vshrl.u32 %v1616, 7
  %v1618 = vsub.s32 6, %v1617
  %v1619 = vrot.slane %v1573, %v1618
  %1621 = vbcast.lane.b32.xlu0 %v1619, 256
  %v1622 = vpop.permute.xlu0 %1621
  %v1623 = vlaneseq
  %v1624 = vshrl.u32 %v1623, 7
  %v1625 = vsub.s32 7, %v1624
  %v1626 = vrot.slane %v1573, %v1625
  %1628 = vbcast.lane.b32.xlu0 %v1626, 256
  %v1629 = vpop.permute.xlu0 %1628
  %v1630 = vld [vmem:[%s0] sm:$0xff]
  %v1631 = vld [vmem:[%s0 + $0x8] sm:$0xff]
  %v1632 = vld [vmem:[%s0 + $0x10] sm:$0xff]
  %v1633 = vld [vmem:[%s0 + $0x18] sm:$0xff]
  %v1634 = vld [vmem:[%s0 + $0x20] sm:$0xff]
  %v1635 = vld [vmem:[%s0 + $0x28] sm:$0xff]
  %v1636 = vld [vmem:[%s0 + $0x30] sm:$0xff]
  %v1637 = vld [vmem:[%s0 + $0x38] sm:$0xff]
  %v1638 = vmul.f32 %v1580, %v1630
  %v1639 = vmul.f32 %v1587, %v1631
  %v1640 = vmul.f32 %v1594, %v1632
  %v1641 = vmul.f32 %v1601, %v1633
  %v1642 = vmul.f32 %v1608, %v1634
  %v1643 = vmul.f32 %v1615, %v1635
  %v1644 = vmul.f32 %v1622, %v1636
  %v1645 = vmul.f32 %v1629, %v1637
  %v1646 = vrot.slane %v1638, 4
  %v1647 = vadd.f32 %v1638, %v1646
  %v1648 = vrot.slane %v1647, 2
  %v1649 = vadd.f32 %v1647, %v1648
  %v1650 = vrot.slane %v1649, 1
  %v1651 = vadd.f32 %v1649, %v1650
  %v1652 = vrot.slane %v1639, 4
  %v1653 = vadd.f32 %v1639, %v1652
  %v1654 = vrot.slane %v1653, 2
  %v1655 = vadd.f32 %v1653, %v1654
  %v1656 = vrot.slane %v1655, 1
  %v1657 = vadd.f32 %v1655, %v1656
  %v1658 = vrot.slane %v1640, 4
  %v1659 = vadd.f32 %v1640, %v1658
  %v1660 = vrot.slane %v1659, 2
  %v1661 = vadd.f32 %v1659, %v1660
  %v1662 = vrot.slane %v1661, 1
  %v1663 = vadd.f32 %v1661, %v1662
  %v1664 = vrot.slane %v1641, 4
  %v1665 = vadd.f32 %v1641, %v1664
  %v1666 = vrot.slane %v1665, 2
  %v1667 = vadd.f32 %v1665, %v1666
  %v1668 = vrot.slane %v1667, 1
  %v1669 = vadd.f32 %v1667, %v1668
  %v1670 = vrot.slane %v1642, 4
  %v1671 = vadd.f32 %v1642, %v1670
  %v1672 = vrot.slane %v1671, 2
  %v1673 = vadd.f32 %v1671, %v1672
  %v1674 = vrot.slane %v1673, 1
  %v1675 = vadd.f32 %v1673, %v1674
  %v1676 = vrot.slane %v1643, 4
  %v1677 = vadd.f32 %v1643, %v1676
  %v1678 = vrot.slane %v1677, 2
  %v1679 = vadd.f32 %v1677, %v1678
  %v1680 = vrot.slane %v1679, 1
  %v1681 = vadd.f32 %v1679, %v1680
  %v1682 = vrot.slane %v1644, 4
  %v1683 = vadd.f32 %v1644, %v1682
  %v1684 = vrot.slane %v1683, 2
  %v1685 = vadd.f32 %v1683, %v1684
  %v1686 = vrot.slane %v1685, 1
  %v1687 = vadd.f32 %v1685, %v1686
  %v1688 = vrot.slane %v1645, 4
  %v1689 = vadd.f32 %v1645, %v1688
  %v1690 = vrot.slane %v1689, 2
  %v1691 = vadd.f32 %v1689, %v1690
  %v1692 = vrot.slane %v1691, 1
  %v1693 = vadd.f32 %v1691, %v1692
  %v1702 = vsel %vm726, %v1657, %v1651
  %v1703 = vsel %vm728, %v1663, %v1702
  %v1704 = vsel %vm730, %v1669, %v1703
  %v1705 = vsel %vm732, %v1675, %v1704
  %v1706 = vsel %vm734, %v1681, %v1705
  %v1707 = vsel %vm736, %v1687, %v1706
  %v1708 = vsel %vm738, %v1693, %v1707
  %v1710 = vld [vmem:[%s4] sm:$0xff]
  %v1711 = vld [vmem:[%s4 + $0x8] sm:$0xff]
  %v1712 = vld [vmem:[%s4 + $0x10] sm:$0xff]
  %v1713 = vld [vmem:[%s4 + $0x18] sm:$0xff]
  %v1714 = vld [vmem:[%s4 + $0x20] sm:$0xff]
  %v1715 = vld [vmem:[%s4 + $0x28] sm:$0xff]
  %v1716 = vld [vmem:[%s4 + $0x30] sm:$0xff]
  %v1717 = vld [vmem:[%s4 + $0x38] sm:$0xff]
  %v1718 = vld [vmem:[%s4 + $0x40] sm:$0xff]
  %v1719 = vld [vmem:[%s4 + $0x48] sm:$0xff]
  %v1720 = vld [vmem:[%s4 + $0x50] sm:$0xff]
  %v1721 = vld [vmem:[%s4 + $0x58] sm:$0xff]
  %v1722 = vld [vmem:[%s4 + $0x60] sm:$0xff]
  %v1723 = vld [vmem:[%s4 + $0x68] sm:$0xff]
  %v1724 = vld [vmem:[%s4 + $0x70] sm:$0xff]
  %v1725 = vld [vmem:[%s4 + $0x78] sm:$0xff]
  %v1726 = vld [vmem:[%s4 + $0x80] sm:$0xff]
  %v1727 = vld [vmem:[%s4 + $0x88] sm:$0xff]
  %v1728 = vld [vmem:[%s4 + $0x90] sm:$0xff]
  %v1729 = vld [vmem:[%s4 + $0x98] sm:$0xff]
  %v1730 = vld [vmem:[%s4 + $0xa0] sm:$0xff]
  %v1731 = vld [vmem:[%s4 + $0xa8] sm:$0xff]
  %v1732 = vld [vmem:[%s4 + $0xb0] sm:$0xff]
  %v1733 = vld [vmem:[%s4 + $0xb8] sm:$0xff]
  %v1734 = vld [vmem:[%s4 + $0xc0] sm:$0xff]
  %v1735 = vld [vmem:[%s4 + $0xc8] sm:$0xff]
  %v1736 = vld [vmem:[%s4 + $0xd0] sm:$0xff]
  %v1737 = vld [vmem:[%s4 + $0xd8] sm:$0xff]
  %v1738 = vld [vmem:[%s4 + $0xe0] sm:$0xff]
  %v1739 = vld [vmem:[%s4 + $0xe8] sm:$0xff]
  %v1740 = vld [vmem:[%s4 + $0xf0] sm:$0xff]
  %v1741 = vld [vmem:[%s4 + $0xf8] sm:$0xff]
  %v1742 = vld [vmem:[%s4 + $0x100] sm:$0xff]
  %v1743 = vld [vmem:[%s4 + $0x108] sm:$0xff]
  %v1744 = vld [vmem:[%s4 + $0x110] sm:$0xff]
  %v1745 = vld [vmem:[%s4 + $0x118] sm:$0xff]
  %v1746 = vld [vmem:[%s4 + $0x120] sm:$0xff]
  %v1747 = vld [vmem:[%s4 + $0x128] sm:$0xff]
  %v1748 = vld [vmem:[%s4 + $0x130] sm:$0xff]
  %v1749 = vld [vmem:[%s4 + $0x138] sm:$0xff]
  %v1750 = vld [vmem:[%s4 + $0x140] sm:$0xff]
  %v1751 = vld [vmem:[%s4 + $0x148] sm:$0xff]
  %v1752 = vld [vmem:[%s4 + $0x150] sm:$0xff]
  %v1753 = vld [vmem:[%s4 + $0x158] sm:$0xff]
  %v1754 = vld [vmem:[%s4 + $0x160] sm:$0xff]
  %v1755 = vld [vmem:[%s4 + $0x168] sm:$0xff]
  %v1756 = vld [vmem:[%s4 + $0x170] sm:$0xff]
  %v1757 = vld [vmem:[%s4 + $0x178] sm:$0xff]
  %v1758 = vld [vmem:[%s4 + $0x180] sm:$0xff]
  %v1759 = vld [vmem:[%s4 + $0x188] sm:$0xff]
  %v1760 = vld [vmem:[%s4 + $0x190] sm:$0xff]
  %v1761 = vld [vmem:[%s4 + $0x198] sm:$0xff]
  %v1762 = vld [vmem:[%s4 + $0x1a0] sm:$0xff]
  %v1763 = vld [vmem:[%s4 + $0x1a8] sm:$0xff]
  %v1764 = vld [vmem:[%s4 + $0x1b0] sm:$0xff]
  %v1765 = vld [vmem:[%s4 + $0x1b8] sm:$0xff]
  %v1766 = vld [vmem:[%s4 + $0x1c0] sm:$0xff]
  %v1767 = vld [vmem:[%s4 + $0x1c8] sm:$0xff]
  %v1768 = vld [vmem:[%s4 + $0x1d0] sm:$0xff]
  %v1769 = vld [vmem:[%s4 + $0x1d8] sm:$0xff]
  %v1770 = vld [vmem:[%s4 + $0x1e0] sm:$0xff]
  %v1771 = vld [vmem:[%s4 + $0x1e8] sm:$0xff]
  %v1772 = vld [vmem:[%s4 + $0x1f0] sm:$0xff]
  %v1773 = vld [vmem:[%s4 + $0x1f8] sm:$0xff]
  %v1774 = vld [vmem:[%s4 + $0x200] sm:$0xff]
  %v1775 = vld [vmem:[%s4 + $0x208] sm:$0xff]
  %v1776 = vld [vmem:[%s4 + $0x210] sm:$0xff]
  %v1777 = vld [vmem:[%s4 + $0x218] sm:$0xff]
  %v1778 = vld [vmem:[%s4 + $0x220] sm:$0xff]
  %v1779 = vld [vmem:[%s4 + $0x228] sm:$0xff]
  %v1780 = vld [vmem:[%s4 + $0x230] sm:$0xff]
  %v1781 = vld [vmem:[%s4 + $0x238] sm:$0xff]
  %v1782 = vld [vmem:[%s4 + $0x240] sm:$0xff]
  %v1783 = vld [vmem:[%s4 + $0x248] sm:$0xff]
  %v1784 = vld [vmem:[%s4 + $0x250] sm:$0xff]
  %v1785 = vld [vmem:[%s4 + $0x258] sm:$0xff]
  %v1786 = vld [vmem:[%s4 + $0x260] sm:$0xff]
  %v1787 = vld [vmem:[%s4 + $0x268] sm:$0xff]
  %v1788 = vld [vmem:[%s4 + $0x270] sm:$0xff]
  %v1789 = vld [vmem:[%s4 + $0x278] sm:$0xff]
  %v1790 = vld [vmem:[%s4 + $0x280] sm:$0xff]
  %v1791 = vld [vmem:[%s4 + $0x288] sm:$0xff]
  %v1792 = vld [vmem:[%s4 + $0x290] sm:$0xff]
  %v1793 = vld [vmem:[%s4 + $0x298] sm:$0xff]
  %v1794 = vld [vmem:[%s4 + $0x2a0] sm:$0xff]
  %v1795 = vld [vmem:[%s4 + $0x2a8] sm:$0xff]
  %v1796 = vld [vmem:[%s4 + $0x2b0] sm:$0xff]
  %v1797 = vld [vmem:[%s4 + $0x2b8] sm:$0xff]
  %v1798 = vld [vmem:[%s4 + $0x2c0] sm:$0xff]
  %v1799 = vld [vmem:[%s4 + $0x2c8] sm:$0xff]
  %v1800 = vld [vmem:[%s4 + $0x2d0] sm:$0xff]
  %v1801 = vld [vmem:[%s4 + $0x2d8] sm:$0xff]
  %v1802 = vld [vmem:[%s4 + $0x2e0] sm:$0xff]
  %v1803 = vld [vmem:[%s4 + $0x2e8] sm:$0xff]
  %v1804 = vld [vmem:[%s4 + $0x2f0] sm:$0xff]
  %v1805 = vld [vmem:[%s4 + $0x2f8] sm:$0xff]
  %v1806 = vld [vmem:[%s4 + $0x300] sm:$0xff]
  %v1807 = vld [vmem:[%s4 + $0x308] sm:$0xff]
  %v1808 = vld [vmem:[%s4 + $0x310] sm:$0xff]
  %v1809 = vld [vmem:[%s4 + $0x318] sm:$0xff]
  %v1810 = vld [vmem:[%s4 + $0x320] sm:$0xff]
  %v1811 = vld [vmem:[%s4 + $0x328] sm:$0xff]
  %v1812 = vld [vmem:[%s4 + $0x330] sm:$0xff]
  %v1813 = vld [vmem:[%s4 + $0x338] sm:$0xff]
  %v1814 = vld [vmem:[%s4 + $0x340] sm:$0xff]
  %v1815 = vld [vmem:[%s4 + $0x348] sm:$0xff]
  %v1816 = vld [vmem:[%s4 + $0x350] sm:$0xff]
  %v1817 = vld [vmem:[%s4 + $0x358] sm:$0xff]
  %v1818 = vld [vmem:[%s4 + $0x360] sm:$0xff]
  %v1819 = vld [vmem:[%s4 + $0x368] sm:$0xff]
  %v1820 = vld [vmem:[%s4 + $0x370] sm:$0xff]
  %v1821 = vld [vmem:[%s4 + $0x378] sm:$0xff]
  %v1822 = vld [vmem:[%s4 + $0x380] sm:$0xff]
  %v1823 = vld [vmem:[%s4 + $0x388] sm:$0xff]
  %v1824 = vld [vmem:[%s4 + $0x390] sm:$0xff]
  %v1825 = vld [vmem:[%s4 + $0x398] sm:$0xff]
  %v1826 = vld [vmem:[%s4 + $0x3a0] sm:$0xff]
  %v1827 = vld [vmem:[%s4 + $0x3a8] sm:$0xff]
  %v1828 = vld [vmem:[%s4 + $0x3b0] sm:$0xff]
  %v1829 = vld [vmem:[%s4 + $0x3b8] sm:$0xff]
  %v1830 = vld [vmem:[%s4 + $0x3c0] sm:$0xff]
  %v1831 = vld [vmem:[%s4 + $0x3c8] sm:$0xff]
  %v1832 = vld [vmem:[%s4 + $0x3d0] sm:$0xff]
  %v1833 = vld [vmem:[%s4 + $0x3d8] sm:$0xff]
  %v1834 = vld [vmem:[%s4 + $0x3e0] sm:$0xff]
  %v1835 = vld [vmem:[%s4 + $0x3e8] sm:$0xff]
  %v1836 = vld [vmem:[%s4 + $0x3f0] sm:$0xff]
  %v1837 = vld [vmem:[%s4 + $0x3f8] sm:$0xff]
  %1838 = vmatprep.subr.mxu0 %v1771
  %1839 = vmatpush1.msra.mxu0 %v1770
  %1840 = vmatprep.subr.mxu0 %v1767
  %1841 = vmatpush1.msra.mxu0 %v1766
  %1842 = vmatprep.subr.mxu0 %v1763
  %1843 = vmatpush1.msra.mxu0 %v1762
  %1844 = vmatprep.subr.mxu0 %v1759
  %1845 = vmatpush1.msra.mxu0 %v1758
  %1846 = vmatprep.subr.mxu0 %v1755
  %1847 = vmatpush1.msra.mxu0 %v1754
  %1848 = vmatprep.subr.mxu0 %v1751
  %1849 = vmatpush1.msra.mxu0 %v1750
  %1850 = vmatprep.subr.mxu0 %v1747
  %1851 = vmatpush1.msra.mxu0 %v1746
  %1852 = vmatprep.subr.mxu0 %v1743
  %1853 = vmatpush1.msra.mxu0 %v1742
  %1854 = vmatprep.subr.mxu0 %v1739
  %1855 = vmatpush1.msra.mxu0 %v1738
  %1856 = vmatprep.subr.mxu0 %v1735
  %1857 = vmatpush1.msra.mxu0 %v1734
  %1858 = vmatprep.subr.mxu0 %v1731
  %1859 = vmatpush1.msra.mxu0 %v1730
  %1860 = vmatprep.subr.mxu0 %v1727
  %1861 = vmatpush1.msra.mxu0 %v1726
  %1862 = vmatprep.subr.mxu0 %v1723
  %1863 = vmatpush1.msra.mxu0 %v1722
  %1864 = vmatprep.subr.mxu0 %v1719
  %1865 = vmatpush1.msra.mxu0 %v1718
  %1866 = vmatprep.subr.mxu0 %v1715
  %1867 = vmatpush1.msra.mxu0 %v1714
  %1868 = vmatprep.subr.mxu0 %v1711
  %1869 = vmatpush1.msra.mxu0 %v1710
  %1870 = vmatprep.subr.mxu0 %v1835
  %1871 = vmatpush2.msra.mxu0 %v1834
  %1872 = vmatprep.subr.mxu0 %v1831
  %1873 = vmatpush2.msra.mxu0 %v1830
  %1874 = vmatprep.subr.mxu0 %v1827
  %1875 = vmatpush2.msra.mxu0 %v1826
  %1876 = vmatprep.subr.mxu0 %v1823
  %1877 = vmatpush2.msra.mxu0 %v1822
  %1878 = vmatprep.subr.mxu0 %v1819
  %1879 = vmatpush2.msra.mxu0 %v1818
  %1880 = vmatprep.subr.mxu0 %v1815
  %1881 = vmatpush2.msra.mxu0 %v1814
  %1882 = vmatprep.subr.mxu0 %v1811
  %1883 = vmatpush2.msra.mxu0 %v1810
  %1884 = vmatprep.subr.mxu0 %v1807
  %1885 = vmatpush2.msra.mxu0 %v1806
  %1886 = vmatprep.subr.mxu0 %v1803
  %1887 = vmatpush2.msra.mxu0 %v1802
  %1888 = vmatprep.subr.mxu0 %v1799
  %1889 = vmatpush2.msra.mxu0 %v1798
  %1890 = vmatprep.subr.mxu0 %v1795
  %1891 = vmatpush2.msra.mxu0 %v1794
  %1892 = vmatprep.subr.mxu0 %v1791
  %1893 = vmatpush2.msra.mxu0 %v1790
  %1894 = vmatprep.subr.mxu0 %v1787
  %1895 = vmatpush2.msra.mxu0 %v1786
  %1896 = vmatprep.subr.mxu0 %v1783
  %1897 = vmatpush2.msra.mxu0 %v1782
  %1898 = vmatprep.subr.mxu0 %v1779
  %1899 = vmatpush2.msra.mxu0 %v1778
  %1900 = vmatprep.subr.mxu0 %v1775
  %1901 = vmatpush2.msra.mxu0 %v1774
  %1902 = vmatprep.mubr.f32.mxu0 %v1184
  %1903 = vmatmul.mubr.f32.gmra.mxu0 %v1708
  %v1904 = vpop.f32.mrf.mxu0
  %v1905 = vadd.f32 %v34, %v1904
  %v1906 = vpop.f32.mrf.mxu0
  %v1907 = vadd.f32 %v38, %v1906
  %1908 = vdwg.mxu0
  %1909 = vmatprep.subr.mxu0 %v1773
  %1910 = vmatpush1.msra.mxu0 %v1772
  %1911 = vmatprep.subr.mxu0 %v1769
  %1912 = vmatpush1.msra.mxu0 %v1768
  %1913 = vmatprep.subr.mxu0 %v1765
  %1914 = vmatpush1.msra.mxu0 %v1764
  %1915 = vmatprep.subr.mxu0 %v1761
  %1916 = vmatpush1.msra.mxu0 %v1760
  %1917 = vmatprep.subr.mxu0 %v1757
  %1918 = vmatpush1.msra.mxu0 %v1756
  %1919 = vmatprep.subr.mxu0 %v1753
  %1920 = vmatpush1.msra.mxu0 %v1752
  %1921 = vmatprep.subr.mxu0 %v1749
  %1922 = vmatpush1.msra.mxu0 %v1748
  %1923 = vmatprep.subr.mxu0 %v1745
  %1924 = vmatpush1.msra.mxu0 %v1744
  %1925 = vmatprep.subr.mxu0 %v1741
  %1926 = vmatpush1.msra.mxu0 %v1740
  %1927 = vmatprep.subr.mxu0 %v1737
  %1928 = vmatpush1.msra.mxu0 %v1736
  %1929 = vmatprep.subr.mxu0 %v1733
  %1930 = vmatpush1.msra.mxu0 %v1732
  %1931 = vmatprep.subr.mxu0 %v1729
  %1932 = vmatpush1.msra.mxu0 %v1728
  %1933 = vmatprep.subr.mxu0 %v1725
  %1934 = vmatpush1.msra.mxu0 %v1724
  %1935 = vmatprep.subr.mxu0 %v1721
  %1936 = vmatpush1.msra.mxu0 %v1720
  %1937 = vmatprep.subr.mxu0 %v1717
  %1938 = vmatpush1.msra.mxu0 %v1716
  %1939 = vmatprep.subr.mxu0 %v1713
  %1940 = vmatpush1.msra.mxu0 %v1712
  %1941 = vmatprep.subr.mxu0 %v1837
  %1942 = vmatpush2.msra.mxu0 %v1836
  %1943 = vmatprep.subr.mxu0 %v1833
  %1944 = vmatpush2.msra.mxu0 %v1832
  %1945 = vmatprep.subr.mxu0 %v1829
  %1946 = vmatpush2.msra.mxu0 %v1828
  %1947 = vmatprep.subr.mxu0 %v1825
  %1948 = vmatpush2.msra.mxu0 %v1824
  %1949 = vmatprep.subr.mxu0 %v1821
  %1950 = vmatpush2.msra.mxu0 %v1820
  %1951 = vmatprep.subr.mxu0 %v1817
  %1952 = vmatpush2.msra.mxu0 %v1816
  %1953 = vmatprep.subr.mxu0 %v1813
  %1954 = vmatpush2.msra.mxu0 %v1812
  %1955 = vmatprep.subr.mxu0 %v1809
  %1956 = vmatpush2.msra.mxu0 %v1808
  %1957 = vmatprep.subr.mxu0 %v1805
  %1958 = vmatpush2.msra.mxu0 %v1804
  %1959 = vmatprep.subr.mxu0 %v1801
  %1960 = vmatpush2.msra.mxu0 %v1800
  %1961 = vmatprep.subr.mxu0 %v1797
  %1962 = vmatpush2.msra.mxu0 %v1796
  %1963 = vmatprep.subr.mxu0 %v1793
  %1964 = vmatpush2.msra.mxu0 %v1792
  %1965 = vmatprep.subr.mxu0 %v1789
  %1966 = vmatpush2.msra.mxu0 %v1788
  %1967 = vmatprep.subr.mxu0 %v1785
  %1968 = vmatpush2.msra.mxu0 %v1784
  %1969 = vmatprep.subr.mxu0 %v1781
  %1970 = vmatpush2.msra.mxu0 %v1780
  %1971 = vmatprep.subr.mxu0 %v1777
  %1972 = vmatpush2.msra.mxu0 %v1776
  %1973 = vmatprep.mubr.f32.mxu0 %v1184
  %1974 = vmatmul.mubr.f32.gmra.mxu0 %v1708
  %v1975 = vpop.f32.mrf.mxu0
  %v1976 = vadd.f32 %v42, %v1975
  %v1977 = vpop.f32.mrf.mxu0
  %v1978 = vadd.f32 %v46, %v1977
  %1979 = vdwg.mxu0
  %v1980 = vxor.u32 %v1905, 2147483648
  %v1981 = vmul.f32 %v1980, 1.442695
  %v1982 = vpow.pop %v1981
  %v1983 = vadd.f32 %v1982, 1.0
  %v1984 = vrcp.pop %v1983
  %v1985 = vmul.f32 1.0, %v1984
  %v1986 = vxor.u32 %v1907, 2147483648
  %v1987 = vmul.f32 %v1986, 1.442695
  %v1988 = vpow.pop %v1987
  %v1989 = vadd.f32 %v1988, 1.0
  %v1990 = vrcp.pop %v1989
  %v1991 = vmul.f32 1.0, %v1990
  %v1992 = vtanh.pop %v1976
  %v1993 = vxor.u32 %v1978, 2147483648
  %v1994 = vmul.f32 %v1993, 1.442695
  %v1995 = vpow.pop %v1994
  %v1996 = vadd.f32 %v1995, 1.0
  %v1997 = vrcp.pop %v1996
  %v1998 = vmul.f32 1.0, %v1997
  %v1999 = vmul.f32 %v1991, %v1182
  %v2000 = vmul.f32 %v1985, %v1992
  %v2001 = vadd.f32 %v1999, %v2000
  %v2002 = vtanh.pop %v2001
  %v2003 = vmul.f32 %v1998, %v2002
  %v2004 = vld [vmem:[%s1] sm:$0xff]
  %v2005 = vld [vmem:[%s1 + $0x8] sm:$0xff]
  %v2006 = vld [vmem:[%s1 + $0x10] sm:$0xff]
  %v2007 = vld [vmem:[%s1 + $0x18] sm:$0xff]
  %v2008 = vld [vmem:[%s1 + $0x20] sm:$0xff]
  %v2009 = vld [vmem:[%s1 + $0x28] sm:$0xff]
  %v2010 = vld [vmem:[%s1 + $0x30] sm:$0xff]
  %v2011 = vld [vmem:[%s1 + $0x38] sm:$0xff]
  %v2012 = vld [vmem:[%s6] sm:$0xff]
  %v2013 = vld [vmem:[%s6 + $0x8] sm:$0xff]
  %v2014 = vld [vmem:[%s6 + $0x10] sm:$0xff]
  %v2015 = vld [vmem:[%s6 + $0x18] sm:$0xff]
  %v2016 = vld [vmem:[%s6 + $0x20] sm:$0xff]
  %v2017 = vld [vmem:[%s6 + $0x28] sm:$0xff]
  %v2018 = vld [vmem:[%s6 + $0x30] sm:$0xff]
  %v2019 = vld [vmem:[%s6 + $0x38] sm:$0xff]
  %v2020 = vld [vmem:[%s6 + $0x40] sm:$0xff]
  %v2021 = vld [vmem:[%s6 + $0x48] sm:$0xff]
  %v2022 = vld [vmem:[%s6 + $0x50] sm:$0xff]
  %v2023 = vld [vmem:[%s6 + $0x58] sm:$0xff]
  %v2024 = vld [vmem:[%s6 + $0x60] sm:$0xff]
  %v2025 = vld [vmem:[%s6 + $0x68] sm:$0xff]
  %v2026 = vld [vmem:[%s6 + $0x70] sm:$0xff]
  %v2027 = vld [vmem:[%s6 + $0x78] sm:$0xff]
  %2028 = vmatprep.subr.mxu0 0.0
  %2029 = vmatpush1.msra.mxu0 %v2027
  %2030 = vmatprep.subr.mxu0 0.0
  %2031 = vmatpush1.msra.mxu0 %v2026
  %2032 = vmatprep.subr.mxu0 0.0
  %2033 = vmatpush1.msra.mxu0 %v2025
  %2034 = vmatprep.subr.mxu0 0.0
  %2035 = vmatpush1.msra.mxu0 %v2024
  %2036 = vmatprep.subr.mxu0 0.0
  %2037 = vmatpush1.msra.mxu0 %v2023
  %2038 = vmatprep.subr.mxu0 0.0
  %2039 = vmatpush1.msra.mxu0 %v2022
  %2040 = vmatprep.subr.mxu0 0.0
  %2041 = vmatpush1.msra.mxu0 %v2021
  %2042 = vmatprep.subr.mxu0 0.0
  %2043 = vmatpush1.msra.mxu0 %v2020
  %2044 = vmatprep.subr.mxu0 0.0
  %2045 = vmatpush1.msra.mxu0 %v2019
  %2046 = vmatprep.subr.mxu0 0.0
  %2047 = vmatpush1.msra.mxu0 %v2018
  %2048 = vmatprep.subr.mxu0 0.0
  %2049 = vmatpush1.msra.mxu0 %v2017
  %2050 = vmatprep.subr.mxu0 0.0
  %2051 = vmatpush1.msra.mxu0 %v2016
  %2052 = vmatprep.subr.mxu0 0.0
  %2053 = vmatpush1.msra.mxu0 %v2015
  %2054 = vmatprep.subr.mxu0 0.0
  %2055 = vmatpush1.msra.mxu0 %v2014
  %2056 = vmatprep.subr.mxu0 0.0
  %2057 = vmatpush1.msra.mxu0 %v2013
  %2058 = vmatprep.subr.mxu0 0.0
  %2059 = vmatpush1.msra.mxu0 %v2012
  %2060 = vmatprep.subr.mxu0 0.0
  %2061 = vmatpush2.msra.mxu0 0.0
  %2062 = vmatprep.subr.mxu0 0.0
  %2063 = vmatpush2.msra.mxu0 0.0
  %2064 = vmatprep.subr.mxu0 0.0
  %2065 = vmatpush2.msra.mxu0 0.0
  %2066 = vmatprep.subr.mxu0 0.0
  %2067 = vmatpush2.msra.mxu0 0.0
  %2068 = vmatprep.subr.mxu0 0.0
  %2069 = vmatpush2.msra.mxu0 0.0
  %2070 = vmatprep.subr.mxu0 0.0
  %2071 = vmatpush2.msra.mxu0 0.0
  %2072 = vmatprep.subr.mxu0 0.0
  %2073 = vmatpush2.msra.mxu0 0.0
  %2074 = vmatprep.subr.mxu0 0.0
  %2075 = vmatpush2.msra.mxu0 0.0
  %2076 = vmatprep.subr.mxu0 0.0
  %2077 = vmatpush2.msra.mxu0 0.0
  %2078 = vmatprep.subr.mxu0 0.0
  %2079 = vmatpush2.msra.mxu0 0.0
  %2080 = vmatprep.subr.mxu0 0.0
  %2081 = vmatpush2.msra.mxu0 0.0
  %2082 = vmatprep.subr.mxu0 0.0
  %2083 = vmatpush2.msra.mxu0 0.0
  %2084 = vmatprep.subr.mxu0 0.0
  %2085 = vmatpush2.msra.mxu0 0.0
  %2086 = vmatprep.subr.mxu0 0.0
  %2087 = vmatpush2.msra.mxu0 0.0
  %2088 = vmatprep.subr.mxu0 0.0
  %2089 = vmatpush2.msra.mxu0 0.0
  %2090 = vmatprep.subr.mxu0 0.0
  %2091 = vmatpush2.msra.mxu0 0.0
  %2092 = vmatprep.mubr.f32.mxu0 0.0
  %2093 = vmatmul.mubr.f32.gmra.mxu0 %v2003
  %v2094 = vpop.f32.mrf.mxu0
  %v2095 = vadd.f32 0.0, %v2094
  %v2096 = vpop.f32.mrf.mxu0
  %2097 = vdwg.mxu0
  %v2099 = vcombine.high %v2095, %v2095
  %v2101 = vunpack.c.l.s4 1966171168
  %v2102 = vunpack.c.0.s8 %v2101
  %v2103 = vlaneseq
  %v2104 = vshrl.u32 %v2103, 7
  %v2105 = vsub.s32 %v2102, %v2104
  %v2106 = vrot.slane %v2095, %v2105
  %v2108 = vunpack.c.l.s4 1966171168
  %v2109 = vunpack.c.0.s8 %v2108
  %v2110 = vlaneseq
  %v2111 = vshrl.u32 %v2110, 7
  %v2112 = vsub.s32 %v2109, %v2111
  %v2113 = vrot.slane %v2099, %v2112
  %v2114 = vcombine.high %v2106, %v2106
  %v2115 = vcombine.high %v2113, %v2113
  %v2117 = vunpack.c.l.s4 1966171168
  %v2118 = vunpack.c.0.s8 %v2117
  %v2119 = vlaneseq
  %v2120 = vshrl.u32 %v2119, 7
  %v2121 = vsub.s32 %v2118, %v2120
  %v2122 = vrot.slane %v2106, %v2121
  %v2124 = vunpack.c.l.s4 1966171168
  %v2125 = vunpack.c.0.s8 %v2124
  %v2126 = vlaneseq
  %v2127 = vshrl.u32 %v2126, 7
  %v2128 = vsub.s32 %v2125, %v2127
  %v2129 = vrot.slane %v2113, %v2128
  %v2131 = vunpack.c.l.s4 1966171168
  %v2132 = vunpack.c.0.s8 %v2131
  %v2133 = vlaneseq
  %v2134 = vshrl.u32 %v2133, 7
  %v2135 = vsub.s32 %v2132, %v2134
  %v2136 = vrot.slane %v2114, %v2135
  %v2138 = vunpack.c.l.s4 1966171168
  %v2139 = vunpack.c.0.s8 %v2138
  %v2140 = vlaneseq
  %v2141 = vshrl.u32 %v2140, 7
  %v2142 = vsub.s32 %v2139, %v2141
  %v2143 = vrot.slane %v2115, %v2142
  %v2144 = vcombine.high %v2122, %v2122
  %v2145 = vcombine.high %v2129, %v2129
  %v2146 = vcombine.high %v2136, %v2136
  %v2147 = vcombine.high %v2143, %v2143
  %v2148 = vlaneseq
  %v2149 = vshrl.u32 %v2148, 7
  %v2150 = vsub.s32 0, %v2149
  %v2151 = vrot.slane %v2122, %v2150
  %v2152 = vlaneseq
  %v2153 = vshrl.u32 %v2152, 7
  %v2154 = vsub.s32 0, %v2153
  %v2155 = vrot.slane %v2136, %v2154
  %v2156 = vlaneseq
  %v2157 = vshrl.u32 %v2156, 7
  %v2158 = vsub.s32 0, %v2157
  %v2159 = vrot.slane %v2144, %v2158
  %v2160 = vlaneseq
  %v2161 = vshrl.u32 %v2160, 7
  %v2162 = vsub.s32 0, %v2161
  %v2163 = vrot.slane %v2146, %v2162
  %v2164 = vlaneseq
  %v2165 = vshrl.u32 %v2164, 7
  %v2166 = vsub.s32 0, %v2165
  %v2167 = vrot.slane %v2129, %v2166
  %v2168 = vlaneseq
  %v2169 = vshrl.u32 %v2168, 7
  %v2170 = vsub.s32 0, %v2169
  %v2171 = vrot.slane %v2143, %v2170
  %v2172 = vlaneseq
  %v2173 = vshrl.u32 %v2172, 7
  %v2174 = vsub.s32 0, %v2173
  %v2175 = vrot.slane %v2145, %v2174
  %v2176 = vlaneseq
  %v2177 = vshrl.u32 %v2176, 7
  %v2178 = vsub.s32 0, %v2177
  %v2179 = vrot.slane %v2147, %v2178
  %v2188 = vadd.f32 %v2004, %v2151
  %v2189 = vadd.f32 %v2005, %v2155
  %v2190 = vadd.f32 %v2006, %v2159
  %v2191 = vadd.f32 %v2007, %v2163
  %v2192 = vadd.f32 %v2008, %v2167
  %v2193 = vadd.f32 %v2009, %v2171
  %v2194 = vadd.f32 %v2010, %v2175
  %v2195 = vadd.f32 %v2011, %v2179
  %v2196 = vtanh.pop %v2188
  %v2197 = vtanh.pop %v2189
  %v2198 = vtanh.pop %v2190
  %v2199 = vtanh.pop %v2191
  %v2200 = vtanh.pop %v2192
  %v2201 = vtanh.pop %v2193
  %v2202 = vtanh.pop %v2194
  %v2203 = vtanh.pop %v2195
  %v2204 = vmul.f32 %v2196, %v56
  %v2205 = vmul.f32 %v2197, %v56
  %v2206 = vmul.f32 %v2198, %v56
  %v2207 = vmul.f32 %v2199, %v56
  %v2208 = vmul.f32 %v2200, %v56
  %v2209 = vmul.f32 %v2201, %v56
  %v2210 = vmul.f32 %v2202, %v56
  %v2211 = vmul.f32 %v2203, %v56
  %v2212 = vsel %vm564, %v2204, 0.0
  %2213 = vadd.xlane.f32.xlu0 %v2212
  %v2214 = vpop.xlane.xlu0 %2213
  %v2215 = vsel %vm564, %v2205, 0.0
  %2216 = vadd.xlane.f32.xlu0 %v2215
  %v2217 = vpop.xlane.xlu0 %2216
  %v2218 = vsel %vm564, %v2206, 0.0
  %2219 = vadd.xlane.f32.xlu0 %v2218
  %v2220 = vpop.xlane.xlu0 %2219
  %v2221 = vsel %vm564, %v2207, 0.0
  %2222 = vadd.xlane.f32.xlu0 %v2221
  %v2223 = vpop.xlane.xlu0 %2222
  %v2224 = vsel %vm564, %v2208, 0.0
  %2225 = vadd.xlane.f32.xlu0 %v2224
  %v2226 = vpop.xlane.xlu0 %2225
  %v2227 = vsel %vm564, %v2209, 0.0
  %2228 = vadd.xlane.f32.xlu0 %v2227
  %v2229 = vpop.xlane.xlu0 %2228
  %v2230 = vsel %vm564, %v2210, 0.0
  %2231 = vadd.xlane.f32.xlu0 %v2230
  %v2232 = vpop.xlane.xlu0 %2231
  %v2233 = vsel %vm564, %v2211, 0.0
  %2234 = vadd.xlane.f32.xlu0 %v2233
  %v2235 = vpop.xlane.xlu0 %2234
  %v2237 = vlaneseq
  %v2238 = vshrl.u32 %v2237, 7
  %v2239 = vsub.s32 0, %v2238
  %v2240 = vrot.slane %v1571, %v2239
  %2242 = vbcast.lane.b32.xlu0 %v2240, 256
  %v2243 = vpop.permute.xlu0 %2242
  %v2244 = vlaneseq
  %v2245 = vshrl.u32 %v2244, 7
  %v2246 = vsub.s32 1, %v2245
  %v2247 = vrot.slane %v1571, %v2246
  %2249 = vbcast.lane.b32.xlu0 %v2247, 256
  %v2250 = vpop.permute.xlu0 %2249
  %v2251 = vlaneseq
  %v2252 = vshrl.u32 %v2251, 7
  %v2253 = vsub.s32 2, %v2252
  %v2254 = vrot.slane %v1571, %v2253
  %2256 = vbcast.lane.b32.xlu0 %v2254, 256
  %v2257 = vpop.permute.xlu0 %2256
  %v2258 = vlaneseq
  %v2259 = vshrl.u32 %v2258, 7
  %v2260 = vsub.s32 3, %v2259
  %v2261 = vrot.slane %v1571, %v2260
  %2263 = vbcast.lane.b32.xlu0 %v2261, 256
  %v2264 = vpop.permute.xlu0 %2263
  %v2265 = vlaneseq
  %v2266 = vshrl.u32 %v2265, 7
  %v2267 = vsub.s32 4, %v2266
  %v2268 = vrot.slane %v1571, %v2267
  %2270 = vbcast.lane.b32.xlu0 %v2268, 256
  %v2271 = vpop.permute.xlu0 %2270
  %v2272 = vlaneseq
  %v2273 = vshrl.u32 %v2272, 7
  %v2274 = vsub.s32 5, %v2273
  %v2275 = vrot.slane %v1571, %v2274
  %2277 = vbcast.lane.b32.xlu0 %v2275, 256
  %v2278 = vpop.permute.xlu0 %2277
  %v2279 = vlaneseq
  %v2280 = vshrl.u32 %v2279, 7
  %v2281 = vsub.s32 6, %v2280
  %v2282 = vrot.slane %v1571, %v2281
  %2284 = vbcast.lane.b32.xlu0 %v2282, 256
  %v2285 = vpop.permute.xlu0 %2284
  %v2286 = vlaneseq
  %v2287 = vshrl.u32 %v2286, 7
  %v2288 = vsub.s32 7, %v2287
  %v2289 = vrot.slane %v1571, %v2288
  %2291 = vbcast.lane.b32.xlu0 %v2289, 256
  %v2292 = vpop.permute.xlu0 %2291
  %v2301 = vadd.f32 %v2214, %v2243
  %v2302 = vadd.f32 %v2217, %v2250
  %v2303 = vadd.f32 %v2220, %v2257
  %v2304 = vadd.f32 %v2223, %v2264
  %v2305 = vadd.f32 %v2226, %v2271
  %v2306 = vadd.f32 %v2229, %v2278
  %v2307 = vadd.f32 %v2232, %v2285
  %v2308 = vadd.f32 %v2235, %v2292
  %2317 = vset.pattern.permute.xlu0 0
  %2318 = vperm.xlu0 %2317, %v2301
  %v2319 = vpop.permute.xlu0 %2318
  %2320 = vset.pattern.permute.xlu0 0
  %2321 = vperm.xlu0 %2320, %v2302
  %v2322 = vpop.permute.xlu0 %2321
  %2323 = vset.pattern.permute.xlu0 0
  %2324 = vperm.xlu0 %2323, %v2303
  %v2325 = vpop.permute.xlu0 %2324
  %2326 = vset.pattern.permute.xlu0 0
  %2327 = vperm.xlu0 %2326, %v2304
  %v2328 = vpop.permute.xlu0 %2327
  %2329 = vset.pattern.permute.xlu0 0
  %2330 = vperm.xlu0 %2329, %v2305
  %v2331 = vpop.permute.xlu0 %2330
  %2332 = vset.pattern.permute.xlu0 0
  %2333 = vperm.xlu0 %2332, %v2306
  %v2334 = vpop.permute.xlu0 %2333
  %2335 = vset.pattern.permute.xlu0 0
  %2336 = vperm.xlu0 %2335, %v2307
  %v2337 = vpop.permute.xlu0 %2336
  %2338 = vset.pattern.permute.xlu0 0
  %2339 = vperm.xlu0 %2338, %v2308
  %v2340 = vpop.permute.xlu0 %2339
  %v2341 = vlaneseq
  %v2342 = vshrl.u32 %v2341, 7
  %v2343 = vsub.s32 %v61, %v2342
  %v2344 = vrot.slane %v2319, %v2343
  %v2345 = vlaneseq
  %v2346 = vshrl.u32 %v2345, 7
  %v2347 = vsub.s32 %v61, %v2346
  %v2348 = vrot.slane %v2322, %v2347
  %v2349 = vlaneseq
  %v2350 = vshrl.u32 %v2349, 7
  %v2351 = vsub.s32 %v61, %v2350
  %v2352 = vrot.slane %v2325, %v2351
  %v2353 = vlaneseq
  %v2354 = vshrl.u32 %v2353, 7
  %v2355 = vsub.s32 %v61, %v2354
  %v2356 = vrot.slane %v2328, %v2355
  %v2357 = vlaneseq
  %v2358 = vshrl.u32 %v2357, 7
  %v2359 = vsub.s32 %v61, %v2358
  %v2360 = vrot.slane %v2331, %v2359
  %v2361 = vlaneseq
  %v2362 = vshrl.u32 %v2361, 7
  %v2363 = vsub.s32 %v61, %v2362
  %v2364 = vrot.slane %v2334, %v2363
  %v2365 = vlaneseq
  %v2366 = vshrl.u32 %v2365, 7
  %v2367 = vsub.s32 %v61, %v2366
  %v2368 = vrot.slane %v2337, %v2367
  %v2369 = vlaneseq
  %v2370 = vshrl.u32 %v2369, 7
  %v2371 = vsub.s32 %v61, %v2370
  %v2372 = vrot.slane %v2340, %v2371
  %v2373 = vsel %vm726, %v2348, %v2344
  %v2374 = vsel %vm728, %v2352, %v2373
  %v2375 = vsel %vm730, %v2356, %v2374
  %v2376 = vsel %vm732, %v2360, %v2375
  %v2377 = vsel %vm734, %v2364, %v2376
  %v2378 = vsel %vm736, %v2368, %v2377
  %v2379 = vsel %vm738, %v2372, %v2378
  %v2381 = vsel %vm741, %v2379, -inf
  %2382 = vmax.index.xlane.f32.xlu0 %v2381
  %v2383 = vpop.xlane.xlu0 %2382
  %v2384 = vlaneseq
  %v2385 = vshrl.u32 %v2384, 7
  %v2386 = vsub.s32 %v61, %v2385
  %v2387 = vrot.slane %v2383, %v2386
  %2388 = vst.msk [vmem:[%s8 + $0x2] sm:$0x1] %vm749, %v2387
  // Predicated region
  $region34: #{lstm_selector_forward.1} parent=0 // pred_check
    _
  $region35: #{lstm_selector_forward.1} parent=0 // pred_check_branch
    %2390 = sbr.rel (0) target = $region37
  $region36: #{lstm_selector_forward.1} parent=0 // pred_region
    _
  $region37: #{lstm_selector_forward.1} parent=0 // pred_fallthru
    _
  // Predicated region
  $region38: #{lstm_selector_forward.1} parent=0 // pred_check
    _
  $region39: #{lstm_selector_forward.1} parent=0 // pred_check_branch
    %2392 = sbr.rel (0) target = $region41
  $region40: #{lstm_selector_forward.1} parent=0 // pred_region
    _
  $region41: #{lstm_selector_forward.1} parent=0 // pred_fallthru
    _

</llo_original>
